<compile_context>
chip_gen: v6e
topology: v6e:2x2x1
jax: 0.10.0
libtpu: 0.0.40
codegen_flags: <defaults>
</compile_context>

<pallas_src>
import functools

import jax
import jax.numpy as jnp
from jax import lax
from jax.experimental import pallas as pl
from jax.experimental.pallas import tpu as pltpu


def _round_up(n, m):
    return ((n + m - 1) // m) * m


def _pick_tile(n, max_tile, quantum):
    """Largest multiple of `quantum` <= max_tile that divides n, else n itself."""
    if n <= max_tile:
        return n
    t = (max_tile // quantum) * quantum
    while t >= quantum:
        if n % t == 0:
            return t
        t -= quantum
    return n


def _pad_gate_axis(a, H, H_pad):
    """Pad a trailing 4*H gate axis (PyTorch i,f,g,o order) to 4*H_pad, gate by gate."""
    if H_pad == H:
        return a
    pads = [(0, 0)] * (a.ndim - 1) + [(0, H_pad - H)]
    return jnp.concatenate(
        [jnp.pad(a[..., k * H:(k + 1) * H], pads) for k in range(4)], axis=-1)


# ------------------------------------------------------------------ parameter prep (hoisted)
def prepare_params(params, *, compute_dtype=jnp.bfloat16):
    """Parameter-only work, done once per parameter set (not per forward call).

    Folds embedding + input projection + both biases into one [V, 4*H_pad] lookup table
    (table[v] = emb[v] @ W_ih^T + b_ih + b_hh), gate-pads / lane-pads / casts everything
    the kernels consume.
    """
    emb, w_ih, w_hh, b_ih, b_hh, w_fc, b_fc = (
        params["emb"], params["w_ih"], params["w_hh"],
        params["b_ih"], params["b_hh"], params["w_fc"], params["b_fc"])
    V, _E = emb.shape
    H = w_hh.shape[1]
    H_pad = _round_up(H, 128)      # per-gate lane alignment -> 4*H_pad % 128 == 0
    V_pad = _round_up(V, 128)

    table = _pad_gate_axis(emb @ w_ih.T + (b_ih + b_hh)[None, :], H, H_pad)   # [V, 4H_pad]
    w_hh_t = jnp.pad(_pad_gate_axis(w_hh.T, H, H_pad),
                     ((0, H_pad - H), (0, 0)))                                 # [H_pad, 4H_pad]
    w_fc_t = jnp.pad(w_fc.T, ((0, H_pad - H), (0, V_pad - V)))                 # [H_pad, V_pad]
    b_fc_r = jnp.pad(b_fc, (0, V_pad - V))[None, :].astype(jnp.float32)        # [1, V_pad]

    return {
        "table": table.astype(compute_dtype),
        "w_hh_t": w_hh_t.astype(compute_dtype),
        "w_fc_t": w_fc_t.astype(compute_dtype),
        "b_fc_r": b_fc_r,
        "V": V, "H": H, "H_pad": H_pad, "V_pad": V_pad,
    }


# ------------------------------------------------------------------------------------ kernels
def _lstm_recurrence_kernel(xg_ref, w_hh_ref, h0_ref, c0_ref,
                            hs_ref, hn_ref, cn_ref,
                            h_s, c_s, *, seq_len, mask_tail):
    """Serial LSTM recurrence over one time tile.

    xg_ref : [tile_T, B_pad, 4*H_pad] bf16   precomputed x@W_ih^T + b_ih + b_hh
    w_hh_ref: [H_pad, 4*H_pad] bf16
    hs_ref : [tile_T, B_pad, H_pad] bf16     per-step hidden states (streamed out)
    h_s/c_s: [B_pad, H_pad] f32 VMEM scratch carrying state across time tiles.
    Tail steps past seq_len (T padded up to the tile) are masked so h/c stay correct.
    """
    H = h0_ref.shape[1]
    tile_T = xg_ref.shape[0]
    t0 = pl.program_id(0) * tile_T

    @pl.when(pl.program_id(0) == 0)
    def _():
        h_s[...] = h0_ref[...]
        c_s[...] = c0_ref[...]

    w_hh = w_hh_ref[...]  # bf16, hoisted load (constant across the loop)

    def step(t, carry):
        h, c = carry
        gates = xg_ref[t] + jnp.dot(h.astype(w_hh.dtype), w_hh,
                                    preferred_element_type=jnp.float32)
        i_g = jax.nn.sigmoid(gates[:, 0 * H:1 * H])   # lane-aligned static slices
        f_g = jax.nn.sigmoid(gates[:, 1 * H:2 * H])
        g_g = jnp.tanh(gates[:, 2 * H:3 * H])
        o_g = jax.nn.sigmoid(gates[:, 3 * H:4 * H])
        c_new = f_g * c + i_g * g_g
        h_new = o_g * jnp.tanh(c_new)
        if mask_tail:
            valid = (t0 + t) < seq_len
            h_new = jnp.where(valid, h_new, h)   # zero-gate pad steps are NOT identity
            c_new = jnp.where(valid, c_new, c)
        hs_ref[t] = h_new.astype(hs_ref.dtype)
        return (h_new, c_new)

    unroll = True if tile_T <= 16 else 4
    h_fin, c_fin = lax.fori_loop(0, tile_T, step, (h_s[...], c_s[...]),
                                 unroll=unroll)
    h_s[...] = h_fin
    c_s[...] = c_fin
    hn_ref[...] = h_fin
    cn_ref[...] = c_fin


def _vocab_proj_kernel(hs_ref, w_fc_ref, b_fc_ref, out_ref):
    """Dense vocab projection for one (vocab tile, row tile): [tile_M,H]@[H,tile_V]."""
    logits = jnp.dot(hs_ref[...], w_fc_ref[...], preferred_element_type=jnp.float32)
    out_ref[...] = (logits + b_fc_ref[...]).astype(out_ref.dtype)


# ------------------------------------------------------------------------------------ wrapper
def language_model_forward(x, hidden, prepared):
    """x: int32 [B, T]; hidden: None or (h0 [1,B,H], c0 [1,B,H]); prepared: prepare_params().

    Returns (logits [B, T, V] f32, (h_n [1,B,H], c_n [1,B,H])), matching the PyTorch
    module (nn.Embedding -> nn.LSTM(batch_first=True, 1 layer) -> nn.Linear).
    """
    table, w_hh_t = prepared["table"], prepared["w_hh_t"]
    w_fc_t, b_fc_r = prepared["w_fc_t"], prepared["b_fc_r"]
    V, H, H_pad, V_pad = prepared["V"], prepared["H"], prepared["H_pad"], prepared["V_pad"]

    B, T = x.shape
    B_pad = _round_up(max(B, 8), 8)
    G = 4 * H_pad
    cdt = table.dtype

    # -- time tiling: pad T up to a multiple of the tile; tail steps masked in-kernel.
    tile_T = min(32, _round_up(T, 8))
    T_pad = _round_up(T, tile_T)
    num_tt = T_pad // tile_T

    # -- glue: fused table gather (embedding + input proj + biases), time-major, bf16.
    xg = jnp.take(table, x.T, axis=0)                                   # [T, B, G]
    xg = jnp.pad(xg, ((0, T_pad - T), (0, B_pad - B), (0, 0)))          # [T_pad, B_pad, G]

    if hidden is None:
        h0 = jnp.zeros((B_pad, H_pad), jnp.float32)
        c0 = jnp.zeros((B_pad, H_pad), jnp.float32)
    else:
        h0 = jnp.pad(hidden[0][0].astype(jnp.float32),
                     ((0, B_pad - B), (0, H_pad - H)))
        c0 = jnp.pad(hidden[1][0].astype(jnp.float32),
                     ((0, B_pad - B), (0, H_pad - H)))

    # VMEM budget for kernel 1 (bf16 weights/streams; v7x has 64 MiB physical).
    vmem1 = int(min(max(
        2 * tile_T * B_pad * G * 2          # xg tiles (double-buffered, bf16)
        + 2 * H_pad * G * 2                 # w_hh (double-buffered, bf16)
        + 2 * tile_T * B_pad * H_pad * 2    # hs out tiles (bf16)
        + 10 * B_pad * H_pad * 4            # h0/c0/hn/cn + h/c scratch (f32)
        + (4 << 20), 32 << 20), 96 << 20))

    # -- kernel 1: serial recurrence over time tiles; h/c live in VMEM scratch.
    hs_tm, h_n, c_n = pl.pallas_call(
        functools.partial(_lstm_recurrence_kernel,
                          seq_len=T, mask_tail=(T_pad != T)),
        out_shape=(
            jax.ShapeDtypeStruct((T_pad, B_pad, H_pad), cdt),
            jax.ShapeDtypeStruct((B_pad, H_pad), jnp.float32),
            jax.ShapeDtypeStruct((B_pad, H_pad), jnp.float32),
        ),
        grid_spec=pltpu.PrefetchScalarGridSpec(
            num_scalar_prefetch=0,
            grid=(num_tt,),
            in_specs=[
                pl.BlockSpec((tile_T, B_pad, G), lambda t: (t, 0, 0)),
                pl.BlockSpec((H_pad, G), lambda t: (0, 0)),
                pl.BlockSpec((B_pad, H_pad), lambda t: (0, 0)),
                pl.BlockSpec((B_pad, H_pad), lambda t: (0, 0)),
            ],
            out_specs=[
                pl.BlockSpec((tile_T, B_pad, H_pad), lambda t: (t, 0, 0)),
                pl.BlockSpec((B_pad, H_pad), lambda t: (0, 0)),
                pl.BlockSpec((B_pad, H_pad), lambda t: (0, 0)),
            ],
            scratch_shapes=[pltpu.VMEM((B_pad, H_pad), jnp.float32),
                            pltpu.VMEM((B_pad, H_pad), jnp.float32)],
        ),
        compiler_params=pltpu.CompilerParams(
            dimension_semantics=("arbitrary",),
            vmem_limit_bytes=vmem1),
    )(xg, w_hh_t, h0, c0)

    # -- glue: small bf16 transpose to batch-major rows, flattened to M = B*T; the big
    # [B,T,V] logits are written directly in final row order by kernel 2 (no transpose).
    hs_bm = jnp.transpose(hs_tm[:T, :B, :], (1, 0, 2))                  # [B, T, H_pad] bf16
    M = B * T
    M8 = _round_up(M, 8)
    tile_M = _pick_tile(M8, 512, 8)
    if tile_M < 64 <= M8:      # degenerate divisor -> pad rows to 256-row tiles instead
        tile_M = 256
    M_pad = _round_up(M8, tile_M)
    hs_flat = jnp.pad(hs_bm.reshape(M, H_pad), ((0, M_pad - M), (0, 0)))

    tile_V = _pick_tile(V_pad, 1024, 128)
    num_v, num_m = V_pad // tile_V, M_pad // tile_M

    vmem2 = int(min(max(
        2 * tile_M * H_pad * 2 + 2 * H_pad * tile_V * 2
        + 2 * tile_M * tile_V * 4 + 2 * tile_V * 4
        + (4 << 20), 32 << 20), 96 << 20))

    # -- kernel 2: vocab tile OUTERMOST so each w_fc tile is DMA'd once and stays
    # VMEM-resident across all M row tiles; both axes independent -> "parallel".
    out_flat = pl.pallas_call(
        _vocab_proj_kernel,
        out_shape=jax.ShapeDtypeStruct((M_pad, V_pad), jnp.float32),
        grid_spec=pltpu.PrefetchScalarGridSpec(
            num_scalar_prefetch=0,
            grid=(num_v, num_m),
            in_specs=[
                pl.BlockSpec((tile_M, H_pad), lambda v, m: (m, 0)),
                pl.BlockSpec((H_pad, tile_V), lambda v, m: (0, v)),
                pl.BlockSpec((1, tile_V), lambda v, m: (0, v)),
            ],
            out_specs=pl.BlockSpec((tile_M, tile_V), lambda v, m: (m, v)),
        ),
        compiler_params=pltpu.CompilerParams(
            dimension_semantics=("parallel", "parallel"),
            vmem_limit_bytes=vmem2),
    )(hs_flat, w_fc_t, b_fc_r)

    out = out_flat[:M].reshape(B, T, V_pad)[:, :, :V]
    return out, (h_n[:B, :H][None], c_n[:B, :H][None])


def init_params(key, vocab_size, embedding_size, hidden_size):
    ks = jax.random.split(key, 7)
    s = 0.1
    return {
        "emb":  s * jax.random.normal(ks[0], (vocab_size, embedding_size), jnp.float32),
        "w_ih": s * jax.random.normal(ks[1], (4 * hidden_size, embedding_size), jnp.float32),
        "w_hh": s * jax.random.normal(ks[2], (4 * hidden_size, hidden_size), jnp.float32),
        "b_ih": s * jax.random.normal(ks[3], (4 * hidden_size,), jnp.float32),
        "b_hh": s * jax.random.normal(ks[4], (4 * hidden_size,), jnp.float32),
        "w_fc": s * jax.random.normal(ks[5], (vocab_size, hidden_size), jnp.float32),
        "b_fc": s * jax.random.normal(ks[6], (vocab_size,), jnp.float32),
    }


def _reference_forward(x, hidden, p):
    """Pure-JAX f32 reference mirroring torch semantics (for sanity check)."""
    B, T = x.shape
    H = p["w_hh"].shape[1]
    xe = jnp.take(p["emb"], x, axis=0)
    h = jnp.zeros((B, H)) if hidden is None else hidden[0][0]
    c = jnp.zeros((B, H)) if hidden is None else hidden[1][0]
    outs = []
    for t in range(T):
        g = xe[:, t] @ p["w_ih"].T + p["b_ih"] + h @ p["w_hh"].T + p["b_hh"]
        i, f, gg, o = (jax.nn.sigmoid(g[:, :H]), jax.nn.sigmoid(g[:, H:2*H]),
                       jnp.tanh(g[:, 2*H:3*H]), jax.nn.sigmoid(g[:, 3*H:4*H]))
        c = f * c + i * gg
        h = o * jnp.tanh(c)
        outs.append(h @ p["w_fc"].T + p["b_fc"])
    return jnp.stack(outs, axis=1), (h[None], c[None])


if __name__ == "__main__":
    vocab_size, embedding_size, hidden_size, num_layers = 32, 10, 20, 1
    B, T = 2, 8

    key = jax.random.PRNGKey(0)
    kp, kx = jax.random.split(key)
    params = init_params(kp, vocab_size, embedding_size, hidden_size)
    prepared = prepare_params(params)            # hoisted, parameter-only work
    x = jax.random.randint(kx, (B, T), 0, vocab_size, dtype=jnp.int32)

    out, (h_n, c_n) = language_model_forward(x, None, prepared)
    jax.block_until_ready((out, h_n, c_n))

    ref_out, (ref_h, ref_c) = _reference_forward(x, None, params)
    assert out.shape == (B, T, vocab_size)
    assert h_n.shape == (num_layers, B, hidden_size)
    assert c_n.shape == (num_layers, B, hidden_size)
    assert jnp.allclose(out, ref_out, atol=2e-2, rtol=2e-2)
    assert jnp.allclose(h_n, ref_h, atol=2e-2, rtol=2e-2)
    assert jnp.allclose(c_n, ref_c, atol=2e-2, rtol=2e-2)

    # Second segment: provided hidden + a length that is not a multiple of the time tile,
    # exercising the masked-tail recurrence and the padded-M projection paths.
    T2 = 5
    x2 = jax.random.randint(jax.random.PRNGKey(1), (B, T2), 0, vocab_size,
                            dtype=jnp.int32)
    out2, (h_n2, c_n2) = language_model_forward(x2, (h_n, c_n), prepared)
    jax.block_until_ready((out2, h_n2, c_n2))
    ref_out2, (ref_h2, ref_c2) = _reference_forward(x2, (h_n, c_n), params)
    assert out2.shape == (B, T2, vocab_size)
    assert jnp.allclose(out2, ref_out2, atol=2e-2, rtol=2e-2)
    assert jnp.allclose(h_n2, ref_h2, atol=2e-2, rtol=2e-2)
    assert jnp.allclose(c_n2, ref_c2, atol=2e-2, rtol=2e-2)

    print("KERNEL_OK")
</pallas_src>

<mosaic_0001>
module attributes {stable_mosaic.version = 11 : i64} {
  func.func @_lstm_recurrence_kernel(%arg0: i32, %arg1: memref<8x8x512xbf16, #tpu.memory_space<vmem>>, %arg2: memref<128x512xbf16, #tpu.memory_space<vmem>>, %arg3: memref<8x128xf32, #tpu.memory_space<vmem>>, %arg4: memref<8x128xf32, #tpu.memory_space<vmem>>, %arg5: memref<8x8x128xbf16, #tpu.memory_space<vmem>>, %arg6: memref<8x128xf32, #tpu.memory_space<vmem>>, %arg7: memref<8x128xf32, #tpu.memory_space<vmem>>, %arg8: memref<8x128xf32, #tpu.memory_space<vmem>>, %arg9: memref<8x128xf32, #tpu.memory_space<vmem>>) attributes {dimension_semantics = [#tpu.dimension_semantics<arbitrary>], iteration_bounds = array<i64: 1>, scalar_prefetch = 0 : i64, scratch_operands = 2 : i64, tpu.core_type = #tpu.core_type<tc>, window_params = [{transform_indices = @transform_0, window_bounds = array<i64: 8, 8, 512>}, {pipeline_mode = #tpu.pipeline_mode<synchronous>, transform_indices = @transform_1, window_bounds = array<i64: 128, 512>}, {pipeline_mode = #tpu.pipeline_mode<synchronous>, transform_indices = @transform_2, window_bounds = array<i64: 8, 128>}, {pipeline_mode = #tpu.pipeline_mode<synchronous>, transform_indices = @transform_3, window_bounds = array<i64: 8, 128>}, {transform_indices = @transform_4, window_bounds = array<i64: 8, 8, 128>}, {pipeline_mode = #tpu.pipeline_mode<synchronous>, transform_indices = @transform_5, window_bounds = array<i64: 8, 128>}, {pipeline_mode = #tpu.pipeline_mode<synchronous>, transform_indices = @transform_6, window_bounds = array<i64: 8, 128>}]} {
    %c0_i32 = arith.constant 0 : i32
    %0 = arith.cmpi eq, %arg0, %c0_i32 : i32
    %1 = arith.extui %0 : i1 to i32
    %c0_i32_0 = arith.constant 0 : i32
    %2 = arith.cmpi ne, %1, %c0_i32_0 : i32
    scf.if %2 {
      %c0_78 = arith.constant 0 : index
      %c0_79 = arith.constant 0 : index
      %306 = vector.load %arg3[%c0_78, %c0_79] : memref<8x128xf32, #tpu.memory_space<vmem>>, vector<8x128xf32>
      %c0_80 = arith.constant 0 : index
      %c0_81 = arith.constant 0 : index
      %307 = vector.load %arg8[%c0_80, %c0_81] : memref<8x128xf32, #tpu.memory_space<vmem>>, vector<8x128xf32>
      tpu.vector_store %arg8[%c0_80, %c0_81], %306 {strides = array<i32>} : memref<8x128xf32, #tpu.memory_space<vmem>>, vector<8x128xf32>,
      %c0_82 = arith.constant 0 : index
      %c0_83 = arith.constant 0 : index
      %308 = vector.load %arg4[%c0_82, %c0_83] : memref<8x128xf32, #tpu.memory_space<vmem>>, vector<8x128xf32>
      %c0_84 = arith.constant 0 : index
      %c0_85 = arith.constant 0 : index
      %309 = vector.load %arg9[%c0_84, %c0_85] : memref<8x128xf32, #tpu.memory_space<vmem>>, vector<8x128xf32>
      tpu.vector_store %arg9[%c0_84, %c0_85], %308 {strides = array<i32>} : memref<8x128xf32, #tpu.memory_space<vmem>>, vector<8x128xf32>,
    } else {
    }
    %c0 = arith.constant 0 : index
    %c0_1 = arith.constant 0 : index
    %3 = vector.load %arg2[%c0, %c0_1] : memref<128x512xbf16, #tpu.memory_space<vmem>>, vector<128x512xbf16>
    %c0_2 = arith.constant 0 : index
    %c0_3 = arith.constant 0 : index
    %4 = vector.load %arg8[%c0_2, %c0_3] : memref<8x128xf32, #tpu.memory_space<vmem>>, vector<8x128xf32>
    %c0_4 = arith.constant 0 : index
    %c0_5 = arith.constant 0 : index
    %5 = vector.load %arg9[%c0_4, %c0_5] : memref<8x128xf32, #tpu.memory_space<vmem>>, vector<8x128xf32>
    %c0_i32_6 = arith.constant 0 : i32
    %6 = arith.index_cast %c0_i32_6 : i32 to index
    %c0_7 = arith.constant 0 : index
    %c0_8 = arith.constant 0 : index
    %7 = vector.load %arg1[%6, %c0_7, %c0_8] : memref<8x8x512xbf16, #tpu.memory_space<vmem>>, vector<1x8x512xbf16>
    %8 = vector.shape_cast %7 : vector<1x8x512xbf16> to vector<8x512xbf16>
    %9 = arith.truncf %4 : vector<8x128xf32> to vector<8x128xbf16>
    %cst = arith.constant dense<0.000000e+00> : vector<8x512xf32>
    %10 = tpu.matmul %9, %3, %cst {dimension_numbers = #tpu.dot_dimension_numbers<[1], [0], [0], [1], [0, 0, 1, 1], [], []>} : vector<8x128xbf16>, vector<128x512xbf16>, vector<8x512xf32> -> vector<8x512xf32>
    %11 = arith.extf %8 : vector<8x512xbf16> to vector<8x512xf32>
    %12 = arith.addf %11, %10 : vector<8x512xf32>
    %13 = vector.extract_strided_slice %12 {offsets = [0, 0], sizes = [8, 128], strides = [1, 1]} : vector<8x512xf32> to vector<8x128xf32>
    %14 = arith.negf %13 : vector<8x128xf32>
    %15 = math.exp %14 : vector<8x128xf32>
    %cst_9 = arith.constant 1.000000e+00 : f32
    %16 = vector.broadcast %cst_9 : f32 to vector<8x128xf32>
    %17 = arith.addf %16, %15 : vector<8x128xf32>
    %18 = arith.divf %16, %17 : vector<8x128xf32>
    %19 = vector.extract_strided_slice %12 {offsets = [0, 128], sizes = [8, 128], strides = [1, 1]} : vector<8x512xf32> to vector<8x128xf32>
    %20 = arith.negf %19 : vector<8x128xf32>
    %21 = math.exp %20 : vector<8x128xf32>
    %cst_10 = arith.constant 1.000000e+00 : f32
    %22 = vector.broadcast %cst_10 : f32 to vector<8x128xf32>
    %23 = arith.addf %22, %21 : vector<8x128xf32>
    %24 = arith.divf %22, %23 : vector<8x128xf32>
    %25 = vector.extract_strided_slice %12 {offsets = [0, 256], sizes = [8, 128], strides = [1, 1]} : vector<8x512xf32> to vector<8x128xf32>
    %26 = math.tanh %25 : vector<8x128xf32>
    %27 = vector.extract_strided_slice %12 {offsets = [0, 384], sizes = [8, 128], strides = [1, 1]} : vector<8x512xf32> to vector<8x128xf32>
    %28 = arith.negf %27 : vector<8x128xf32>
    %29 = math.exp %28 : vector<8x128xf32>
    %cst_11 = arith.constant 1.000000e+00 : f32
    %30 = vector.broadcast %cst_11 : f32 to vector<8x128xf32>
    %31 = arith.addf %30, %29 : vector<8x128xf32>
    %32 = arith.divf %30, %31 : vector<8x128xf32>
    %33 = arith.mulf %24, %5 : vector<8x128xf32>
    %34 = arith.mulf %18, %26 : vector<8x128xf32>
    %35 = arith.addf %33, %34 : vector<8x128xf32>
    %36 = math.tanh %35 : vector<8x128xf32>
    %37 = arith.mulf %32, %36 : vector<8x128xf32>
    %38 = arith.truncf %37 : vector<8x128xf32> to vector<8x128xbf16>
    %39 = arith.index_cast %c0_i32_6 : i32 to index
    %c0_12 = arith.constant 0 : index
    %c0_13 = arith.constant 0 : index
    %40 = vector.load %arg5[%39, %c0_12, %c0_13] : memref<8x8x128xbf16, #tpu.memory_space<vmem>>, vector<1x8x128xbf16>
    %41 = vector.shape_cast %40 : vector<1x8x128xbf16> to vector<8x128xbf16>
    %42 = vector.shape_cast %38 : vector<8x128xbf16> to vector<1x8x128xbf16>
    tpu.vector_store %arg5[%39, %c0_12, %c0_13], %42 {strides = array<i32>} : memref<8x8x128xbf16, #tpu.memory_space<vmem>>, vector<1x8x128xbf16>,
    %c1_i32 = arith.constant 1 : i32
    %43 = arith.index_cast %c1_i32 : i32 to index
    %c0_14 = arith.constant 0 : index
    %c0_15 = arith.constant 0 : index
    %44 = vector.load %arg1[%43, %c0_14, %c0_15] : memref<8x8x512xbf16, #tpu.memory_space<vmem>>, vector<1x8x512xbf16>
    %45 = vector.shape_cast %44 : vector<1x8x512xbf16> to vector<8x512xbf16>
    %46 = arith.truncf %37 : vector<8x128xf32> to vector<8x128xbf16>
    %cst_16 = arith.constant dense<0.000000e+00> : vector<8x512xf32>
    %47 = tpu.matmul %46, %3, %cst_16 {dimension_numbers = #tpu.dot_dimension_numbers<[1], [0], [0], [1], [0, 0, 1, 1], [], []>} : vector<8x128xbf16>, vector<128x512xbf16>, vector<8x512xf32> -> vector<8x512xf32>
    %48 = arith.extf %45 : vector<8x512xbf16> to vector<8x512xf32>
    %49 = arith.addf %48, %47 : vector<8x512xf32>
    %50 = vector.extract_strided_slice %49 {offsets = [0, 0], sizes = [8, 128], strides = [1, 1]} : vector<8x512xf32> to vector<8x128xf32>
    %51 = arith.negf %50 : vector<8x128xf32>
    %52 = math.exp %51 : vector<8x128xf32>
    %cst_17 = arith.constant 1.000000e+00 : f32
    %53 = vector.broadcast %cst_17 : f32 to vector<8x128xf32>
    %54 = arith.addf %53, %52 : vector<8x128xf32>
    %55 = arith.divf %53, %54 : vector<8x128xf32>
    %56 = vector.extract_strided_slice %49 {offsets = [0, 128], sizes = [8, 128], strides = [1, 1]} : vector<8x512xf32> to vector<8x128xf32>
    %57 = arith.negf %56 : vector<8x128xf32>
    %58 = math.exp %57 : vector<8x128xf32>
    %cst_18 = arith.constant 1.000000e+00 : f32
    %59 = vector.broadcast %cst_18 : f32 to vector<8x128xf32>
    %60 = arith.addf %59, %58 : vector<8x128xf32>
    %61 = arith.divf %59, %60 : vector<8x128xf32>
    %62 = vector.extract_strided_slice %49 {offsets = [0, 256], sizes = [8, 128], strides = [1, 1]} : vector<8x512xf32> to vector<8x128xf32>
    %63 = math.tanh %62 : vector<8x128xf32>
    %64 = vector.extract_strided_slice %49 {offsets = [0, 384], sizes = [8, 128], strides = [1, 1]} : vector<8x512xf32> to vector<8x128xf32>
    %65 = arith.negf %64 : vector<8x128xf32>
    %66 = math.exp %65 : vector<8x128xf32>
    %cst_19 = arith.constant 1.000000e+00 : f32
    %67 = vector.broadcast %cst_19 : f32 to vector<8x128xf32>
    %68 = arith.addf %67, %66 : vector<8x128xf32>
    %69 = arith.divf %67, %68 : vector<8x128xf32>
    %70 = arith.mulf %61, %35 : vector<8x128xf32>
    %71 = arith.mulf %55, %63 : vector<8x128xf32>
    %72 = arith.addf %70, %71 : vector<8x128xf32>
    %73 = math.tanh %72 : vector<8x128xf32>
    %74 = arith.mulf %69, %73 : vector<8x128xf32>
    %75 = arith.truncf %74 : vector<8x128xf32> to vector<8x128xbf16>
    %76 = arith.index_cast %c1_i32 : i32 to index
    %c0_20 = arith.constant 0 : index
    %c0_21 = arith.constant 0 : index
    %77 = vector.load %arg5[%76, %c0_20, %c0_21] : memref<8x8x128xbf16, #tpu.memory_space<vmem>>, vector<1x8x128xbf16>
    %78 = vector.shape_cast %77 : vector<1x8x128xbf16> to vector<8x128xbf16>
    %79 = vector.shape_cast %75 : vector<8x128xbf16> to vector<1x8x128xbf16>
    tpu.vector_store %arg5[%76, %c0_20, %c0_21], %79 {strides = array<i32>} : memref<8x8x128xbf16, #tpu.memory_space<vmem>>, vector<1x8x128xbf16>,
    %c2_i32 = arith.constant 2 : i32
    %80 = arith.index_cast %c2_i32 : i32 to index
    %c0_22 = arith.constant 0 : index
    %c0_23 = arith.constant 0 : index
    %81 = vector.load %arg1[%80, %c0_22, %c0_23] : memref<8x8x512xbf16, #tpu.memory_space<vmem>>, vector<1x8x512xbf16>
    %82 = vector.shape_cast %81 : vector<1x8x512xbf16> to vector<8x512xbf16>
    %83 = arith.truncf %74 : vector<8x128xf32> to vector<8x128xbf16>
    %cst_24 = arith.constant dense<0.000000e+00> : vector<8x512xf32>
    %84 = tpu.matmul %83, %3, %cst_24 {dimension_numbers = #tpu.dot_dimension_numbers<[1], [0], [0], [1], [0, 0, 1, 1], [], []>} : vector<8x128xbf16>, vector<128x512xbf16>, vector<8x512xf32> -> vector<8x512xf32>
    %85 = arith.extf %82 : vector<8x512xbf16> to vector<8x512xf32>
    %86 = arith.addf %85, %84 : vector<8x512xf32>
    %87 = vector.extract_strided_slice %86 {offsets = [0, 0], sizes = [8, 128], strides = [1, 1]} : vector<8x512xf32> to vector<8x128xf32>
    %88 = arith.negf %87 : vector<8x128xf32>
    %89 = math.exp %88 : vector<8x128xf32>
    %cst_25 = arith.constant 1.000000e+00 : f32
    %90 = vector.broadcast %cst_25 : f32 to vector<8x128xf32>
    %91 = arith.addf %90, %89 : vector<8x128xf32>
    %92 = arith.divf %90, %91 : vector<8x128xf32>
    %93 = vector.extract_strided_slice %86 {offsets = [0, 128], sizes = [8, 128], strides = [1, 1]} : vector<8x512xf32> to vector<8x128xf32>
    %94 = arith.negf %93 : vector<8x128xf32>
    %95 = math.exp %94 : vector<8x128xf32>
    %cst_26 = arith.constant 1.000000e+00 : f32
    %96 = vector.broadcast %cst_26 : f32 to vector<8x128xf32>
    %97 = arith.addf %96, %95 : vector<8x128xf32>
    %98 = arith.divf %96, %97 : vector<8x128xf32>
    %99 = vector.extract_strided_slice %86 {offsets = [0, 256], sizes = [8, 128], strides = [1, 1]} : vector<8x512xf32> to vector<8x128xf32>
    %100 = math.tanh %99 : vector<8x128xf32>
    %101 = vector.extract_strided_slice %86 {offsets = [0, 384], sizes = [8, 128], strides = [1, 1]} : vector<8x512xf32> to vector<8x128xf32>
    %102 = arith.negf %101 : vector<8x128xf32>
    %103 = math.exp %102 : vector<8x128xf32>
    %cst_27 = arith.constant 1.000000e+00 : f32
    %104 = vector.broadcast %cst_27 : f32 to vector<8x128xf32>
    %105 = arith.addf %104, %103 : vector<8x128xf32>
    %106 = arith.divf %104, %105 : vector<8x128xf32>
    %107 = arith.mulf %98, %72 : vector<8x128xf32>
    %108 = arith.mulf %92, %100 : vector<8x128xf32>
    %109 = arith.addf %107, %108 : vector<8x128xf32>
    %110 = math.tanh %109 : vector<8x128xf32>
    %111 = arith.mulf %106, %110 : vector<8x128xf32>
    %112 = arith.truncf %111 : vector<8x128xf32> to vector<8x128xbf16>
    %113 = arith.index_cast %c2_i32 : i32 to index
    %c0_28 = arith.constant 0 : index
    %c0_29 = arith.constant 0 : index
    %114 = vector.load %arg5[%113, %c0_28, %c0_29] : memref<8x8x128xbf16, #tpu.memory_space<vmem>>, vector<1x8x128xbf16>
    %115 = vector.shape_cast %114 : vector<1x8x128xbf16> to vector<8x128xbf16>
    %116 = vector.shape_cast %112 : vector<8x128xbf16> to vector<1x8x128xbf16>
    tpu.vector_store %arg5[%113, %c0_28, %c0_29], %116 {strides = array<i32>} : memref<8x8x128xbf16, #tpu.memory_space<vmem>>, vector<1x8x128xbf16>,
    %c3_i32 = arith.constant 3 : i32
    %117 = arith.index_cast %c3_i32 : i32 to index
    %c0_30 = arith.constant 0 : index
    %c0_31 = arith.constant 0 : index
    %118 = vector.load %arg1[%117, %c0_30, %c0_31] : memref<8x8x512xbf16, #tpu.memory_space<vmem>>, vector<1x8x512xbf16>
    %119 = vector.shape_cast %118 : vector<1x8x512xbf16> to vector<8x512xbf16>
    %120 = arith.truncf %111 : vector<8x128xf32> to vector<8x128xbf16>
    %cst_32 = arith.constant dense<0.000000e+00> : vector<8x512xf32>
    %121 = tpu.matmul %120, %3, %cst_32 {dimension_numbers = #tpu.dot_dimension_numbers<[1], [0], [0], [1], [0, 0, 1, 1], [], []>} : vector<8x128xbf16>, vector<128x512xbf16>, vector<8x512xf32> -> vector<8x512xf32>
    %122 = arith.extf %119 : vector<8x512xbf16> to vector<8x512xf32>
    %123 = arith.addf %122, %121 : vector<8x512xf32>
    %124 = vector.extract_strided_slice %123 {offsets = [0, 0], sizes = [8, 128], strides = [1, 1]} : vector<8x512xf32> to vector<8x128xf32>
    %125 = arith.negf %124 : vector<8x128xf32>
    %126 = math.exp %125 : vector<8x128xf32>
    %cst_33 = arith.constant 1.000000e+00 : f32
    %127 = vector.broadcast %cst_33 : f32 to vector<8x128xf32>
    %128 = arith.addf %127, %126 : vector<8x128xf32>
    %129 = arith.divf %127, %128 : vector<8x128xf32>
    %130 = vector.extract_strided_slice %123 {offsets = [0, 128], sizes = [8, 128], strides = [1, 1]} : vector<8x512xf32> to vector<8x128xf32>
    %131 = arith.negf %130 : vector<8x128xf32>
    %132 = math.exp %131 : vector<8x128xf32>
    %cst_34 = arith.constant 1.000000e+00 : f32
    %133 = vector.broadcast %cst_34 : f32 to vector<8x128xf32>
    %134 = arith.addf %133, %132 : vector<8x128xf32>
    %135 = arith.divf %133, %134 : vector<8x128xf32>
    %136 = vector.extract_strided_slice %123 {offsets = [0, 256], sizes = [8, 128], strides = [1, 1]} : vector<8x512xf32> to vector<8x128xf32>
    %137 = math.tanh %136 : vector<8x128xf32>
    %138 = vector.extract_strided_slice %123 {offsets = [0, 384], sizes = [8, 128], strides = [1, 1]} : vector<8x512xf32> to vector<8x128xf32>
    %139 = arith.negf %138 : vector<8x128xf32>
    %140 = math.exp %139 : vector<8x128xf32>
    %cst_35 = arith.constant 1.000000e+00 : f32
    %141 = vector.broadcast %cst_35 : f32 to vector<8x128xf32>
    %142 = arith.addf %141, %140 : vector<8x128xf32>
    %143 = arith.divf %141, %142 : vector<8x128xf32>
    %144 = arith.mulf %135, %109 : vector<8x128xf32>
    %145 = arith.mulf %129, %137 : vector<8x128xf32>
    %146 = arith.addf %144, %145 : vector<8x128xf32>
    %147 = math.tanh %146 : vector<8x128xf32>
    %148 = arith.mulf %143, %147 : vector<8x128xf32>
    %149 = arith.truncf %148 : vector<8x128xf32> to vector<8x128xbf16>
    %150 = arith.index_cast %c3_i32 : i32 to index
    %c0_36 = arith.constant 0 : index
    %c0_37 = arith.constant 0 : index
    %151 = vector.load %arg5[%150, %c0_36, %c0_37] : memref<8x8x128xbf16, #tpu.memory_space<vmem>>, vector<1x8x128xbf16>
    %152 = vector.shape_cast %151 : vector<1x8x128xbf16> to vector<8x128xbf16>
    %153 = vector.shape_cast %149 : vector<8x128xbf16> to vector<1x8x128xbf16>
    tpu.vector_store %arg5[%150, %c0_36, %c0_37], %153 {strides = array<i32>} : memref<8x8x128xbf16, #tpu.memory_space<vmem>>, vector<1x8x128xbf16>,
    %c4_i32 = arith.constant 4 : i32
    %154 = arith.index_cast %c4_i32 : i32 to index
    %c0_38 = arith.constant 0 : index
    %c0_39 = arith.constant 0 : index
    %155 = vector.load %arg1[%154, %c0_38, %c0_39] : memref<8x8x512xbf16, #tpu.memory_space<vmem>>, vector<1x8x512xbf16>
    %156 = vector.shape_cast %155 : vector<1x8x512xbf16> to vector<8x512xbf16>
    %157 = arith.truncf %148 : vector<8x128xf32> to vector<8x128xbf16>
    %cst_40 = arith.constant dense<0.000000e+00> : vector<8x512xf32>
    %158 = tpu.matmul %157, %3, %cst_40 {dimension_numbers = #tpu.dot_dimension_numbers<[1], [0], [0], [1], [0, 0, 1, 1], [], []>} : vector<8x128xbf16>, vector<128x512xbf16>, vector<8x512xf32> -> vector<8x512xf32>
    %159 = arith.extf %156 : vector<8x512xbf16> to vector<8x512xf32>
    %160 = arith.addf %159, %158 : vector<8x512xf32>
    %161 = vector.extract_strided_slice %160 {offsets = [0, 0], sizes = [8, 128], strides = [1, 1]} : vector<8x512xf32> to vector<8x128xf32>
    %162 = arith.negf %161 : vector<8x128xf32>
    %163 = math.exp %162 : vector<8x128xf32>
    %cst_41 = arith.constant 1.000000e+00 : f32
    %164 = vector.broadcast %cst_41 : f32 to vector<8x128xf32>
    %165 = arith.addf %164, %163 : vector<8x128xf32>
    %166 = arith.divf %164, %165 : vector<8x128xf32>
    %167 = vector.extract_strided_slice %160 {offsets = [0, 128], sizes = [8, 128], strides = [1, 1]} : vector<8x512xf32> to vector<8x128xf32>
    %168 = arith.negf %167 : vector<8x128xf32>
    %169 = math.exp %168 : vector<8x128xf32>
    %cst_42 = arith.constant 1.000000e+00 : f32
    %170 = vector.broadcast %cst_42 : f32 to vector<8x128xf32>
    %171 = arith.addf %170, %169 : vector<8x128xf32>
    %172 = arith.divf %170, %171 : vector<8x128xf32>
    %173 = vector.extract_strided_slice %160 {offsets = [0, 256], sizes = [8, 128], strides = [1, 1]} : vector<8x512xf32> to vector<8x128xf32>
    %174 = math.tanh %173 : vector<8x128xf32>
    %175 = vector.extract_strided_slice %160 {offsets = [0, 384], sizes = [8, 128], strides = [1, 1]} : vector<8x512xf32> to vector<8x128xf32>
    %176 = arith.negf %175 : vector<8x128xf32>
    %177 = math.exp %176 : vector<8x128xf32>
    %cst_43 = arith.constant 1.000000e+00 : f32
    %178 = vector.broadcast %cst_43 : f32 to vector<8x128xf32>
    %179 = arith.addf %178, %177 : vector<8x128xf32>
    %180 = arith.divf %178, %179 : vector<8x128xf32>
    %181 = arith.mulf %172, %146 : vector<8x128xf32>
    %182 = arith.mulf %166, %174 : vector<8x128xf32>
    %183 = arith.addf %181, %182 : vector<8x128xf32>
    %184 = math.tanh %183 : vector<8x128xf32>
    %185 = arith.mulf %180, %184 : vector<8x128xf32>
    %186 = arith.truncf %185 : vector<8x128xf32> to vector<8x128xbf16>
    %187 = arith.index_cast %c4_i32 : i32 to index
    %c0_44 = arith.constant 0 : index
    %c0_45 = arith.constant 0 : index
    %188 = vector.load %arg5[%187, %c0_44, %c0_45] : memref<8x8x128xbf16, #tpu.memory_space<vmem>>, vector<1x8x128xbf16>
    %189 = vector.shape_cast %188 : vector<1x8x128xbf16> to vector<8x128xbf16>
    %190 = vector.shape_cast %186 : vector<8x128xbf16> to vector<1x8x128xbf16>
    tpu.vector_store %arg5[%187, %c0_44, %c0_45], %190 {strides = array<i32>} : memref<8x8x128xbf16, #tpu.memory_space<vmem>>, vector<1x8x128xbf16>,
    %c5_i32 = arith.constant 5 : i32
    %191 = arith.index_cast %c5_i32 : i32 to index
    %c0_46 = arith.constant 0 : index
    %c0_47 = arith.constant 0 : index
    %192 = vector.load %arg1[%191, %c0_46, %c0_47] : memref<8x8x512xbf16, #tpu.memory_space<vmem>>, vector<1x8x512xbf16>
    %193 = vector.shape_cast %192 : vector<1x8x512xbf16> to vector<8x512xbf16>
    %194 = arith.truncf %185 : vector<8x128xf32> to vector<8x128xbf16>
    %cst_48 = arith.constant dense<0.000000e+00> : vector<8x512xf32>
    %195 = tpu.matmul %194, %3, %cst_48 {dimension_numbers = #tpu.dot_dimension_numbers<[1], [0], [0], [1], [0, 0, 1, 1], [], []>} : vector<8x128xbf16>, vector<128x512xbf16>, vector<8x512xf32> -> vector<8x512xf32>
    %196 = arith.extf %193 : vector<8x512xbf16> to vector<8x512xf32>
    %197 = arith.addf %196, %195 : vector<8x512xf32>
    %198 = vector.extract_strided_slice %197 {offsets = [0, 0], sizes = [8, 128], strides = [1, 1]} : vector<8x512xf32> to vector<8x128xf32>
    %199 = arith.negf %198 : vector<8x128xf32>
    %200 = math.exp %199 : vector<8x128xf32>
    %cst_49 = arith.constant 1.000000e+00 : f32
    %201 = vector.broadcast %cst_49 : f32 to vector<8x128xf32>
    %202 = arith.addf %201, %200 : vector<8x128xf32>
    %203 = arith.divf %201, %202 : vector<8x128xf32>
    %204 = vector.extract_strided_slice %197 {offsets = [0, 128], sizes = [8, 128], strides = [1, 1]} : vector<8x512xf32> to vector<8x128xf32>
    %205 = arith.negf %204 : vector<8x128xf32>
    %206 = math.exp %205 : vector<8x128xf32>
    %cst_50 = arith.constant 1.000000e+00 : f32
    %207 = vector.broadcast %cst_50 : f32 to vector<8x128xf32>
    %208 = arith.addf %207, %206 : vector<8x128xf32>
    %209 = arith.divf %207, %208 : vector<8x128xf32>
    %210 = vector.extract_strided_slice %197 {offsets = [0, 256], sizes = [8, 128], strides = [1, 1]} : vector<8x512xf32> to vector<8x128xf32>
    %211 = math.tanh %210 : vector<8x128xf32>
    %212 = vector.extract_strided_slice %197 {offsets = [0, 384], sizes = [8, 128], strides = [1, 1]} : vector<8x512xf32> to vector<8x128xf32>
    %213 = arith.negf %212 : vector<8x128xf32>
    %214 = math.exp %213 : vector<8x128xf32>
    %cst_51 = arith.constant 1.000000e+00 : f32
    %215 = vector.broadcast %cst_51 : f32 to vector<8x128xf32>
    %216 = arith.addf %215, %214 : vector<8x128xf32>
    %217 = arith.divf %215, %216 : vector<8x128xf32>
    %218 = arith.mulf %209, %183 : vector<8x128xf32>
    %219 = arith.mulf %203, %211 : vector<8x128xf32>
    %220 = arith.addf %218, %219 : vector<8x128xf32>
    %221 = math.tanh %220 : vector<8x128xf32>
    %222 = arith.mulf %217, %221 : vector<8x128xf32>
    %223 = arith.truncf %222 : vector<8x128xf32> to vector<8x128xbf16>
    %224 = arith.index_cast %c5_i32 : i32 to index
    %c0_52 = arith.constant 0 : index
    %c0_53 = arith.constant 0 : index
    %225 = vector.load %arg5[%224, %c0_52, %c0_53] : memref<8x8x128xbf16, #tpu.memory_space<vmem>>, vector<1x8x128xbf16>
    %226 = vector.shape_cast %225 : vector<1x8x128xbf16> to vector<8x128xbf16>
    %227 = vector.shape_cast %223 : vector<8x128xbf16> to vector<1x8x128xbf16>
    tpu.vector_store %arg5[%224, %c0_52, %c0_53], %227 {strides = array<i32>} : memref<8x8x128xbf16, #tpu.memory_space<vmem>>, vector<1x8x128xbf16>,
    %c6_i32 = arith.constant 6 : i32
    %228 = arith.index_cast %c6_i32 : i32 to index
    %c0_54 = arith.constant 0 : index
    %c0_55 = arith.constant 0 : index
    %229 = vector.load %arg1[%228, %c0_54, %c0_55] : memref<8x8x512xbf16, #tpu.memory_space<vmem>>, vector<1x8x512xbf16>
    %230 = vector.shape_cast %229 : vector<1x8x512xbf16> to vector<8x512xbf16>
    %231 = arith.truncf %222 : vector<8x128xf32> to vector<8x128xbf16>
    %cst_56 = arith.constant dense<0.000000e+00> : vector<8x512xf32>
    %232 = tpu.matmul %231, %3, %cst_56 {dimension_numbers = #tpu.dot_dimension_numbers<[1], [0], [0], [1], [0, 0, 1, 1], [], []>} : vector<8x128xbf16>, vector<128x512xbf16>, vector<8x512xf32> -> vector<8x512xf32>
    %233 = arith.extf %230 : vector<8x512xbf16> to vector<8x512xf32>
    %234 = arith.addf %233, %232 : vector<8x512xf32>
    %235 = vector.extract_strided_slice %234 {offsets = [0, 0], sizes = [8, 128], strides = [1, 1]} : vector<8x512xf32> to vector<8x128xf32>
    %236 = arith.negf %235 : vector<8x128xf32>
    %237 = math.exp %236 : vector<8x128xf32>
    %cst_57 = arith.constant 1.000000e+00 : f32
    %238 = vector.broadcast %cst_57 : f32 to vector<8x128xf32>
    %239 = arith.addf %238, %237 : vector<8x128xf32>
    %240 = arith.divf %238, %239 : vector<8x128xf32>
    %241 = vector.extract_strided_slice %234 {offsets = [0, 128], sizes = [8, 128], strides = [1, 1]} : vector<8x512xf32> to vector<8x128xf32>
    %242 = arith.negf %241 : vector<8x128xf32>
    %243 = math.exp %242 : vector<8x128xf32>
    %cst_58 = arith.constant 1.000000e+00 : f32
    %244 = vector.broadcast %cst_58 : f32 to vector<8x128xf32>
    %245 = arith.addf %244, %243 : vector<8x128xf32>
    %246 = arith.divf %244, %245 : vector<8x128xf32>
    %247 = vector.extract_strided_slice %234 {offsets = [0, 256], sizes = [8, 128], strides = [1, 1]} : vector<8x512xf32> to vector<8x128xf32>
    %248 = math.tanh %247 : vector<8x128xf32>
    %249 = vector.extract_strided_slice %234 {offsets = [0, 384], sizes = [8, 128], strides = [1, 1]} : vector<8x512xf32> to vector<8x128xf32>
    %250 = arith.negf %249 : vector<8x128xf32>
    %251 = math.exp %250 : vector<8x128xf32>
    %cst_59 = arith.constant 1.000000e+00 : f32
    %252 = vector.broadcast %cst_59 : f32 to vector<8x128xf32>
    %253 = arith.addf %252, %251 : vector<8x128xf32>
    %254 = arith.divf %252, %253 : vector<8x128xf32>
    %255 = arith.mulf %246, %220 : vector<8x128xf32>
    %256 = arith.mulf %240, %248 : vector<8x128xf32>
    %257 = arith.addf %255, %256 : vector<8x128xf32>
    %258 = math.tanh %257 : vector<8x128xf32>
    %259 = arith.mulf %254, %258 : vector<8x128xf32>
    %260 = arith.truncf %259 : vector<8x128xf32> to vector<8x128xbf16>
    %261 = arith.index_cast %c6_i32 : i32 to index
    %c0_60 = arith.constant 0 : index
    %c0_61 = arith.constant 0 : index
    %262 = vector.load %arg5[%261, %c0_60, %c0_61] : memref<8x8x128xbf16, #tpu.memory_space<vmem>>, vector<1x8x128xbf16>
    %263 = vector.shape_cast %262 : vector<1x8x128xbf16> to vector<8x128xbf16>
    %264 = vector.shape_cast %260 : vector<8x128xbf16> to vector<1x8x128xbf16>
    tpu.vector_store %arg5[%261, %c0_60, %c0_61], %264 {strides = array<i32>} : memref<8x8x128xbf16, #tpu.memory_space<vmem>>, vector<1x8x128xbf16>,
    %c7_i32 = arith.constant 7 : i32
    %265 = arith.index_cast %c7_i32 : i32 to index
    %c0_62 = arith.constant 0 : index
    %c0_63 = arith.constant 0 : index
    %266 = vector.load %arg1[%265, %c0_62, %c0_63] : memref<8x8x512xbf16, #tpu.memory_space<vmem>>, vector<1x8x512xbf16>
    %267 = vector.shape_cast %266 : vector<1x8x512xbf16> to vector<8x512xbf16>
    %268 = arith.truncf %259 : vector<8x128xf32> to vector<8x128xbf16>
    %cst_64 = arith.constant dense<0.000000e+00> : vector<8x512xf32>
    %269 = tpu.matmul %268, %3, %cst_64 {dimension_numbers = #tpu.dot_dimension_numbers<[1], [0], [0], [1], [0, 0, 1, 1], [], []>} : vector<8x128xbf16>, vector<128x512xbf16>, vector<8x512xf32> -> vector<8x512xf32>
    %270 = arith.extf %267 : vector<8x512xbf16> to vector<8x512xf32>
    %271 = arith.addf %270, %269 : vector<8x512xf32>
    %272 = vector.extract_strided_slice %271 {offsets = [0, 0], sizes = [8, 128], strides = [1, 1]} : vector<8x512xf32> to vector<8x128xf32>
    %273 = arith.negf %272 : vector<8x128xf32>
    %274 = math.exp %273 : vector<8x128xf32>
    %cst_65 = arith.constant 1.000000e+00 : f32
    %275 = vector.broadcast %cst_65 : f32 to vector<8x128xf32>
    %276 = arith.addf %275, %274 : vector<8x128xf32>
    %277 = arith.divf %275, %276 : vector<8x128xf32>
    %278 = vector.extract_strided_slice %271 {offsets = [0, 128], sizes = [8, 128], strides = [1, 1]} : vector<8x512xf32> to vector<8x128xf32>
    %279 = arith.negf %278 : vector<8x128xf32>
    %280 = math.exp %279 : vector<8x128xf32>
    %cst_66 = arith.constant 1.000000e+00 : f32
    %281 = vector.broadcast %cst_66 : f32 to vector<8x128xf32>
    %282 = arith.addf %281, %280 : vector<8x128xf32>
    %283 = arith.divf %281, %282 : vector<8x128xf32>
    %284 = vector.extract_strided_slice %271 {offsets = [0, 256], sizes = [8, 128], strides = [1, 1]} : vector<8x512xf32> to vector<8x128xf32>
    %285 = math.tanh %284 : vector<8x128xf32>
    %286 = vector.extract_strided_slice %271 {offsets = [0, 384], sizes = [8, 128], strides = [1, 1]} : vector<8x512xf32> to vector<8x128xf32>
    %287 = arith.negf %286 : vector<8x128xf32>
    %288 = math.exp %287 : vector<8x128xf32>
    %cst_67 = arith.constant 1.000000e+00 : f32
    %289 = vector.broadcast %cst_67 : f32 to vector<8x128xf32>
    %290 = arith.addf %289, %288 : vector<8x128xf32>
    %291 = arith.divf %289, %290 : vector<8x128xf32>
    %292 = arith.mulf %283, %257 : vector<8x128xf32>
    %293 = arith.mulf %277, %285 : vector<8x128xf32>
    %294 = arith.addf %292, %293 : vector<8x128xf32>
    %295 = math.tanh %294 : vector<8x128xf32>
    %296 = arith.mulf %291, %295 : vector<8x128xf32>
    %297 = arith.truncf %296 : vector<8x128xf32> to vector<8x128xbf16>
    %298 = arith.index_cast %c7_i32 : i32 to index
    %c0_68 = arith.constant 0 : index
    %c0_69 = arith.constant 0 : index
    %299 = vector.load %arg5[%298, %c0_68, %c0_69] : memref<8x8x128xbf16, #tpu.memory_space<vmem>>, vector<1x8x128xbf16>
    %300 = vector.shape_cast %299 : vector<1x8x128xbf16> to vector<8x128xbf16>
    %301 = vector.shape_cast %297 : vector<8x128xbf16> to vector<1x8x128xbf16>
    tpu.vector_store %arg5[%298, %c0_68, %c0_69], %301 {strides = array<i32>} : memref<8x8x128xbf16, #tpu.memory_space<vmem>>, vector<1x8x128xbf16>,
    %c8_i32 = arith.constant 8 : i32
    %c0_70 = arith.constant 0 : index
    %c0_71 = arith.constant 0 : index
    %302 = vector.load %arg8[%c0_70, %c0_71] : memref<8x128xf32, #tpu.memory_space<vmem>>, vector<8x128xf32>
    tpu.vector_store %arg8[%c0_70, %c0_71], %296 {strides = array<i32>} : memref<8x128xf32, #tpu.memory_space<vmem>>, vector<8x128xf32>,
    %c0_72 = arith.constant 0 : index
    %c0_73 = arith.constant 0 : index
    %303 = vector.load %arg9[%c0_72, %c0_73] : memref<8x128xf32, #tpu.memory_space<vmem>>, vector<8x128xf32>
    tpu.vector_store %arg9[%c0_72, %c0_73], %294 {strides = array<i32>} : memref<8x128xf32, #tpu.memory_space<vmem>>, vector<8x128xf32>,
    %c0_74 = arith.constant 0 : index
    %c0_75 = arith.constant 0 : index
    %304 = vector.load %arg6[%c0_74, %c0_75] : memref<8x128xf32, #tpu.memory_space<vmem>>, vector<8x128xf32>
    tpu.vector_store %arg6[%c0_74, %c0_75], %296 {strides = array<i32>} : memref<8x128xf32, #tpu.memory_space<vmem>>, vector<8x128xf32>,
    %c0_76 = arith.constant 0 : index
    %c0_77 = arith.constant 0 : index
    %305 = vector.load %arg7[%c0_76, %c0_77] : memref<8x128xf32, #tpu.memory_space<vmem>>, vector<8x128xf32>
    tpu.vector_store %arg7[%c0_76, %c0_77], %294 {strides = array<i32>} : memref<8x128xf32, #tpu.memory_space<vmem>>, vector<8x128xf32>,
    return
  }
  func.func @transform_0(%arg0: i32) -> (i32, i32, i32) {
    %c0_i32 = arith.constant 0 : i32
    %c0_i32_0 = arith.constant 0 : i32
    %c0_i32_1 = arith.constant 0 : i32
    return %arg0, %c0_i32, %c0_i32_0 : i32, i32, i32
  }
  func.func @transform_1(%arg0: i32) -> (i32, i32) {
    %c0_i32 = arith.constant 0 : i32
    %c0_i32_0 = arith.constant 0 : i32
    %c0_i32_1 = arith.constant 0 : i32
    return %c0_i32, %c0_i32_0 : i32, i32
  }
  func.func @transform_2(%arg0: i32) -> (i32, i32) {
    %c0_i32 = arith.constant 0 : i32
    %c0_i32_0 = arith.constant 0 : i32
    %c0_i32_1 = arith.constant 0 : i32
    return %c0_i32, %c0_i32_0 : i32, i32
  }
  func.func @transform_3(%arg0: i32) -> (i32, i32) {
    %c0_i32 = arith.constant 0 : i32
    %c0_i32_0 = arith.constant 0 : i32
    %c0_i32_1 = arith.constant 0 : i32
    return %c0_i32, %c0_i32_0 : i32, i32
  }
  func.func @transform_4(%arg0: i32) -> (i32, i32, i32) {
    %c0_i32 = arith.constant 0 : i32
    %c0_i32_0 = arith.constant 0 : i32
    %c0_i32_1 = arith.constant 0 : i32
    return %arg0, %c0_i32, %c0_i32_0 : i32, i32, i32
  }
  func.func @transform_5(%arg0: i32) -> (i32, i32) {
    %c0_i32 = arith.constant 0 : i32
    %c0_i32_0 = arith.constant 0 : i32
    %c0_i32_1 = arith.constant 0 : i32
    return %c0_i32, %c0_i32_0 : i32, i32
  }
  func.func @transform_6(%arg0: i32) -> (i32, i32) {
    %c0_i32 = arith.constant 0 : i32
    %c0_i32_0 = arith.constant 0 : i32
    %c0_i32_1 = arith.constant 0 : i32
    return %c0_i32, %c0_i32_0 : i32, i32
  }
}

</mosaic_0001>

<llo_original>
// kernel: tpu_custom_call.1
$region0: #{tpu_custom_call.1}
  #allocation0 [shape = 'u32[]', space=smem, size = 0x4, offset = 0x4, fixed_abs, tag = 'smem constant byte address 0x4 - core index']
  #allocation1 [shape = 'u32[144,128]{1,0:T(1,128)}', space=vmem, size = 0x12000, scoped, tag = 'internal scratch']
  #allocation2 [shape = 'f32[8,128]{1,0:T(8,128)}', space=vmem, size = 0x1000, scoped, tag = 'scratch operand']
  #allocation3 [shape = 'f32[8,128]{1,0:T(8,128)}', space=vmem, size = 0x1000, scoped, tag = 'scratch operand']
  %s0 = inlined_call_operand.hbm [shape: bf16[8,8,512], index: 0, kind: input, shape index: {}]
  %s1 = inlined_call_operand.hbm [shape: bf16[128,512], index: 1, kind: input, shape index: {}]
  %s2 = inlined_call_operand.hbm [shape: f32[8,128], index: 2, kind: input, shape index: {}]
  %s3 = inlined_call_operand.hbm [shape: f32[8,128], index: 3, kind: input, shape index: {}]
  %s4 = inlined_call_operand.hbm [shape: bf16[8,8,128], index: 4, kind: output, shape index: {0}]
  %s5 = inlined_call_operand.hbm [shape: f32[8,128], index: 5, kind: output, shape index: {1}]
  %s6 = inlined_call_operand.hbm [shape: f32[8,128], index: 6, kind: output, shape index: {2}]
  %7 = xla_tuple %s4, %s5, %s6
  %s8 = sld [smem:[#allocation0]]
  $region62: #{tpu_custom_call.1} parent=0
    _
  %s10 = ssub.s32 1, %s8
  %s11 = scalar_select 0, %s10, %s8
  $region1: #{tpu_custom_call.1} parent=0
    #allocation4 [shape = 'u8[65536]{0}', space=vmem, size = 0x10000, scoped, tag = 'input window, operand 0, single buffered']
    #allocation5 [shape = 's32[1]{0}', space=sflag, size = 0x4, scoped, tag = 'scoped memory for tpu_custom_call.1']
    #allocation6 [shape = 's32[1]{0}', space=sflag, size = 0x4, scoped, tag = 'scoped memory for tpu_custom_call.1']
    #allocation7 [shape = 'u8[131072]{0}', space=vmem, size = 0x20000, scoped, tag = 'input window, operand 1, single buffered']
    #allocation8 [shape = 's32[1]{0}', space=sflag, size = 0x4, scoped, tag = 'scoped memory for tpu_custom_call.1']
    #allocation9 [shape = 'u8[4096]{0}', space=vmem, size = 0x1000, scoped, tag = 'input window, operand 2, single buffered']
    #allocation10 [shape = 'u8[4096]{0}', space=vmem, size = 0x1000, scoped, tag = 'input window, operand 3, single buffered']
    #allocation11 [shape = 's32[1]{0}', space=sflag, size = 0x4, scoped, tag = 'scoped memory for tpu_custom_call.1']
    #allocation12 [shape = 'u8[16384]{0}', space=vmem, size = 0x4000, scoped, tag = 'output window, operand 0, single buffered']
    #allocation13 [shape = 'u8[4096]{0}', space=vmem, size = 0x1000, scoped, tag = 'output window, operand 1, single buffered']
    #allocation14 [shape = 's32[1]{0}', space=sflag, size = 0x4, scoped, tag = 'scoped memory for tpu_custom_call.1']
    #allocation15 [shape = 'u8[4096]{0}', space=vmem, size = 0x1000, scoped, tag = 'output window, operand 2, single buffered']
    %12 = vsyncpa [#allocation5], 0
    %13 = vsyncpa [#allocation8], 0
    %14 = vsyncpa [#allocation11], 0
    %15 = vsyncpa [#allocation6], 0
    %16 = vsyncpa [#allocation14], 0
    // Predicated region
    $region2: #{tpu_custom_call.1} parent=1 // pred_check
      _
    $region3: #{tpu_custom_call.1} parent=1 // pred_check_branch
      %18 = sbr.rel (0) target = $region5
    $region4: #{tpu_custom_call.1} parent=1 // pred_region
      %s20 = ssub.s32 2048, 2048
      %21 = vsyncadd [#allocation5], %s20
      %s22 = sshll.u32 [#allocation4], 4
      %s23 = int_to_ptr.vmem [resolvable:$true] %s22
      %28 = dma.hbm_to_vmem [thread:$0]  %s0, 2048, %s23, [#allocation5], 256, 256, 16
    $region5: #{tpu_custom_call.1} parent=1 // pred_fallthru
      _
    // Predicated region
    $region6: #{tpu_custom_call.1} parent=1 // pred_check
      _
    $region7: #{tpu_custom_call.1} parent=1 // pred_check_branch
      %30 = sbr.rel (0) target = $region9
    $region8: #{tpu_custom_call.1} parent=1 // pred_region
      %s32 = ssub.s32 4096, 4096
      %33 = vsyncadd [#allocation8], %s32
      %s34 = sshll.u32 [#allocation7], 4
      %s35 = int_to_ptr.vmem [resolvable:$true] %s34
      %40 = dma.hbm_to_vmem [thread:$0]  %s1, 4096, %s35, [#allocation8], 256, 256, 16
    $region9: #{tpu_custom_call.1} parent=1 // pred_fallthru
      _
    // Predicated region
    $region10: #{tpu_custom_call.1} parent=1 // pred_check
      _
    $region11: #{tpu_custom_call.1} parent=1 // pred_check_branch
      %42 = sbr.rel (0) target = $region13
    $region12: #{tpu_custom_call.1} parent=1 // pred_region
      %s44 = ssub.s32 128, 128
      %45 = vsyncadd [#allocation8], %s44
      %s47 = sshll.u32 [#allocation9], 4
      %s48 = int_to_ptr.vmem [resolvable:$true] %s47
      %50 = dma.hbm_to_vmem [thread:$0]  %s2, 128, %s48, [#allocation8]
    $region13: #{tpu_custom_call.1} parent=1 // pred_fallthru
      _
    // Predicated region
    $region14: #{tpu_custom_call.1} parent=1 // pred_check
      _
    $region15: #{tpu_custom_call.1} parent=1 // pred_check_branch
      %52 = sbr.rel (0) target = $region17
    $region16: #{tpu_custom_call.1} parent=1 // pred_region
      %s54 = ssub.s32 128, 128
      %55 = vsyncadd [#allocation11], %s54
      %s57 = sshll.u32 [#allocation10], 4
      %s58 = int_to_ptr.vmem [resolvable:$true] %s57
      %60 = dma.hbm_to_vmem [thread:$0]  %s3, 128, %s58, [#allocation11]
    $region17: #{tpu_custom_call.1} parent=1 // pred_fallthru
      _
    // Predicated region
    $region18: #{tpu_custom_call.1} parent=1 // pred_check
      _
    $region19: #{tpu_custom_call.1} parent=1 // pred_check_branch
      %62 = sbr.rel (0) target = $region21
    $region20: #{tpu_custom_call.1} parent=1 // pred_region
      %63 = dma.done [#allocation5], 2048
    $region21: #{tpu_custom_call.1} parent=1 // pred_fallthru
      _
    // Predicated region
    $region22: #{tpu_custom_call.1} parent=1 // pred_check
      _
    $region23: #{tpu_custom_call.1} parent=1 // pred_check_branch
      %65 = sbr.rel (0) target = $region25
    $region24: #{tpu_custom_call.1} parent=1 // pred_region
      %66 = dma.done [#allocation8], 4096
    $region25: #{tpu_custom_call.1} parent=1 // pred_fallthru
      _
    // Predicated region
    $region26: #{tpu_custom_call.1} parent=1 // pred_check
      _
    $region27: #{tpu_custom_call.1} parent=1 // pred_check_branch
      %68 = sbr.rel (0) target = $region29
    $region28: #{tpu_custom_call.1} parent=1 // pred_region
      %69 = dma.done [#allocation8], 128
    $region29: #{tpu_custom_call.1} parent=1 // pred_fallthru
      _
    // Predicated region
    $region30: #{tpu_custom_call.1} parent=1 // pred_check
      _
    $region31: #{tpu_custom_call.1} parent=1 // pred_check_branch
      %71 = sbr.rel (0) target = $region33
    $region32: #{tpu_custom_call.1} parent=1 // pred_region
      %72 = dma.done [#allocation11], 128
    $region33: #{tpu_custom_call.1} parent=1 // pred_fallthru
      _
    %p74 = scmp.eq.s32.totalorder 0, 0
    // Predicated region
    $region34: #{tpu_custom_call.1} parent=1 // pred_check
      %p75 = pneg %p74
    $region35: #{tpu_custom_call.1} parent=1 // pred_check_branch
      %77 = sbr.rel (%p75) target = $region37
    $region36: #{tpu_custom_call.1} parent=1 // pred_region
      %v78 = vld [vmem:[#allocation9] sm:$0xff]
      %79 = vst [vmem:[#allocation2] sm:$0xff] %v78
      %v80 = vld [vmem:[#allocation10] sm:$0xff]
      %81 = vst [vmem:[#allocation3] sm:$0xff] %v80
    $region37: #{tpu_custom_call.1} parent=1 // pred_fallthru
      _
    %v82 = vld [vmem:[#allocation7] sm:$0xff]
    %v83 = vld [vmem:[#allocation7 + $0x8] sm:$0xff]
    %v84 = vld [vmem:[#allocation7 + $0x10] sm:$0xff]
    %v85 = vld [vmem:[#allocation7 + $0x18] sm:$0xff]
    %v86 = vld [vmem:[#allocation7 + $0x20] sm:$0xff]
    %v87 = vld [vmem:[#allocation7 + $0x28] sm:$0xff]
    %v88 = vld [vmem:[#allocation7 + $0x30] sm:$0xff]
    %v89 = vld [vmem:[#allocation7 + $0x38] sm:$0xff]
    %v90 = vld [vmem:[#allocation7 + $0x40] sm:$0xff]
    %v91 = vld [vmem:[#allocation7 + $0x48] sm:$0xff]
    %v92 = vld [vmem:[#allocation7 + $0x50] sm:$0xff]
    %v93 = vld [vmem:[#allocation7 + $0x58] sm:$0xff]
    %v94 = vld [vmem:[#allocation7 + $0x60] sm:$0xff]
    %v95 = vld [vmem:[#allocation7 + $0x68] sm:$0xff]
    %v96 = vld [vmem:[#allocation7 + $0x70] sm:$0xff]
    %v97 = vld [vmem:[#allocation7 + $0x78] sm:$0xff]
    %v98 = vld [vmem:[#allocation7 + $0x80] sm:$0xff]
    %v99 = vld [vmem:[#allocation7 + $0x88] sm:$0xff]
    %v100 = vld [vmem:[#allocation7 + $0x90] sm:$0xff]
    %v101 = vld [vmem:[#allocation7 + $0x98] sm:$0xff]
    %v102 = vld [vmem:[#allocation7 + $0xa0] sm:$0xff]
    %v103 = vld [vmem:[#allocation7 + $0xa8] sm:$0xff]
    %v104 = vld [vmem:[#allocation7 + $0xb0] sm:$0xff]
    %v105 = vld [vmem:[#allocation7 + $0xb8] sm:$0xff]
    %v106 = vld [vmem:[#allocation7 + $0xc0] sm:$0xff]
    %v107 = vld [vmem:[#allocation7 + $0xc8] sm:$0xff]
    %v108 = vld [vmem:[#allocation7 + $0xd0] sm:$0xff]
    %v109 = vld [vmem:[#allocation7 + $0xd8] sm:$0xff]
    %v110 = vld [vmem:[#allocation7 + $0xe0] sm:$0xff]
    %v111 = vld [vmem:[#allocation7 + $0xe8] sm:$0xff]
    %v112 = vld [vmem:[#allocation7 + $0xf0] sm:$0xff]
    %v113 = vld [vmem:[#allocation7 + $0xf8] sm:$0xff]
    %v114 = vld [vmem:[#allocation2] sm:$0xff]
    %v115 = vld [vmem:[#allocation3] sm:$0xff]
    %v116 = vld [vmem:[#allocation4] sm:$0xff]
    %v117 = vld [vmem:[#allocation4 + $0x8] sm:$0xff]
    %v118 = vpack.c.bf16 %v114, %v114
    %v151 = vunpack.c.l.b16 %v82
    %v152 = vunpack.c.h.b16 %v82
    %v153 = vunpack.c.l.b16 %v83
    %v154 = vunpack.c.h.b16 %v83
    %v155 = vunpack.c.l.b16 %v84
    %v156 = vunpack.c.h.b16 %v84
    %v157 = vunpack.c.l.b16 %v85
    %v158 = vunpack.c.h.b16 %v85
    %v159 = vunpack.c.l.b16 %v86
    %v160 = vunpack.c.h.b16 %v86
    %v161 = vunpack.c.l.b16 %v87
    %v162 = vunpack.c.h.b16 %v87
    %v163 = vunpack.c.l.b16 %v88
    %v164 = vunpack.c.h.b16 %v88
    %v165 = vunpack.c.l.b16 %v89
    %v166 = vunpack.c.h.b16 %v89
    %v167 = vunpack.c.l.b16 %v90
    %v168 = vunpack.c.h.b16 %v90
    %v169 = vunpack.c.l.b16 %v91
    %v170 = vunpack.c.h.b16 %v91
    %v171 = vunpack.c.l.b16 %v92
    %v172 = vunpack.c.h.b16 %v92
    %v173 = vunpack.c.l.b16 %v93
    %v174 = vunpack.c.h.b16 %v93
    %v175 = vunpack.c.l.b16 %v94
    %v176 = vunpack.c.h.b16 %v94
    %v177 = vunpack.c.l.b16 %v95
    %v178 = vunpack.c.h.b16 %v95
    %v179 = vunpack.c.l.b16 %v96
    %v180 = vunpack.c.h.b16 %v96
    %v181 = vunpack.c.l.b16 %v97
    %v182 = vunpack.c.h.b16 %v97
    %v183 = vunpack.c.l.b16 %v98
    %v184 = vunpack.c.h.b16 %v98
    %v185 = vunpack.c.l.b16 %v99
    %v186 = vunpack.c.h.b16 %v99
    %v187 = vunpack.c.l.b16 %v100
    %v188 = vunpack.c.h.b16 %v100
    %v189 = vunpack.c.l.b16 %v101
    %v190 = vunpack.c.h.b16 %v101
    %v191 = vunpack.c.l.b16 %v102
    %v192 = vunpack.c.h.b16 %v102
    %v193 = vunpack.c.l.b16 %v103
    %v194 = vunpack.c.h.b16 %v103
    %v195 = vunpack.c.l.b16 %v104
    %v196 = vunpack.c.h.b16 %v104
    %v197 = vunpack.c.l.b16 %v105
    %v198 = vunpack.c.h.b16 %v105
    %v199 = vunpack.c.l.b16 %v106
    %v200 = vunpack.c.h.b16 %v106
    %v201 = vunpack.c.l.b16 %v107
    %v202 = vunpack.c.h.b16 %v107
    %v203 = vunpack.c.l.b16 %v108
    %v204 = vunpack.c.h.b16 %v108
    %v205 = vunpack.c.l.b16 %v109
    %v206 = vunpack.c.h.b16 %v109
    %v207 = vunpack.c.l.b16 %v110
    %v208 = vunpack.c.h.b16 %v110
    %v209 = vunpack.c.l.b16 %v111
    %v210 = vunpack.c.h.b16 %v111
    %v211 = vunpack.c.l.b16 %v112
    %v212 = vunpack.c.h.b16 %v112
    %v213 = vunpack.c.l.b16 %v113
    %v214 = vunpack.c.h.b16 %v113
    %v215 = vpack.c.b16 %v155, %v151
    %v216 = vpack.c.b16 %v156, %v152
    %v217 = vpack.c.b16 %v157, %v153
    %v218 = vpack.c.b16 %v158, %v154
    %v219 = vpack.c.b16 %v163, %v159
    %v220 = vpack.c.b16 %v164, %v160
    %v221 = vpack.c.b16 %v165, %v161
    %v222 = vpack.c.b16 %v166, %v162
    %v223 = vpack.c.b16 %v171, %v167
    %v224 = vpack.c.b16 %v172, %v168
    %v225 = vpack.c.b16 %v173, %v169
    %v226 = vpack.c.b16 %v174, %v170
    %v227 = vpack.c.b16 %v179, %v175
    %v228 = vpack.c.b16 %v180, %v176
    %v229 = vpack.c.b16 %v181, %v177
    %v230 = vpack.c.b16 %v182, %v178
    %v231 = vpack.c.b16 %v187, %v183
    %v232 = vpack.c.b16 %v188, %v184
    %v233 = vpack.c.b16 %v189, %v185
    %v234 = vpack.c.b16 %v190, %v186
    %v235 = vpack.c.b16 %v195, %v191
    %v236 = vpack.c.b16 %v196, %v192
    %v237 = vpack.c.b16 %v197, %v193
    %v238 = vpack.c.b16 %v198, %v194
    %v239 = vpack.c.b16 %v203, %v199
    %v240 = vpack.c.b16 %v204, %v200
    %v241 = vpack.c.b16 %v205, %v201
    %v242 = vpack.c.b16 %v206, %v202
    %v243 = vpack.c.b16 %v211, %v207
    %v244 = vpack.c.b16 %v212, %v208
    %v245 = vpack.c.b16 %v213, %v209
    %v246 = vpack.c.b16 %v214, %v210
    %279 = vmatprep.subr.bf16.mxu0 %v244
    %280 = vmatpush1.bf16.msra.mxu0 %v243
    %281 = vmatprep.subr.bf16.mxu0 %v240
    %282 = vmatpush1.bf16.msra.mxu0 %v239
    %283 = vmatprep.subr.bf16.mxu0 %v236
    %284 = vmatpush1.bf16.msra.mxu0 %v235
    %285 = vmatprep.subr.bf16.mxu0 %v232
    %286 = vmatpush1.bf16.msra.mxu0 %v231
    %287 = vmatprep.subr.bf16.mxu0 %v228
    %288 = vmatpush1.bf16.msra.mxu0 %v227
    %289 = vmatprep.subr.bf16.mxu0 %v224
    %290 = vmatpush1.bf16.msra.mxu0 %v223
    %291 = vmatprep.subr.bf16.mxu0 %v220
    %292 = vmatpush1.bf16.msra.mxu0 %v219
    %293 = vmatprep.subr.bf16.mxu0 %v216
    %294 = vmatpush1.bf16.msra.mxu0 %v215
    %295 = vmatprep.subr.bf16.mxu0 0
    %296 = vmatpush2.bf16.msra.mxu0 0
    %297 = vmatprep.subr.bf16.mxu0 0
    %298 = vmatpush2.bf16.msra.mxu0 0
    %299 = vmatprep.subr.bf16.mxu0 0
    %300 = vmatpush2.bf16.msra.mxu0 0
    %301 = vmatprep.subr.bf16.mxu0 0
    %302 = vmatpush2.bf16.msra.mxu0 0
    %303 = vmatprep.subr.bf16.mxu0 0
    %304 = vmatpush2.bf16.msra.mxu0 0
    %305 = vmatprep.subr.bf16.mxu0 0
    %306 = vmatpush2.bf16.msra.mxu0 0
    %307 = vmatprep.subr.bf16.mxu0 0
    %308 = vmatpush2.bf16.msra.mxu0 0
    %309 = vmatprep.subr.bf16.mxu0 0
    %310 = vmatpush2.bf16.msra.mxu0 0
    %311 = vmatprep.mubr.bf16.mxu0 0
    %312 = vmatmul.mubr.bf16.gmra.mxu0 %v118
    %v313 = vpop.f32.mrf.mxu0
    %v314 = vadd.f32 0.0, %v313
    %v315 = vpop.f32.mrf.mxu0
    %v316 = vadd.f32 0.0, %v315
    %v317 = vpop.f32.mrf.mxu0
    %v318 = vpop.f32.mrf.mxu0
    %319 = vdwg.mxu0
    %320 = vmatprep.subr.bf16.mxu0 %v246
    %321 = vmatpush1.bf16.msra.mxu0 %v245
    %322 = vmatprep.subr.bf16.mxu0 %v242
    %323 = vmatpush1.bf16.msra.mxu0 %v241
    %324 = vmatprep.subr.bf16.mxu0 %v238
    %325 = vmatpush1.bf16.msra.mxu0 %v237
    %326 = vmatprep.subr.bf16.mxu0 %v234
    %327 = vmatpush1.bf16.msra.mxu0 %v233
    %328 = vmatprep.subr.bf16.mxu0 %v230
    %329 = vmatpush1.bf16.msra.mxu0 %v229
    %330 = vmatprep.subr.bf16.mxu0 %v226
    %331 = vmatpush1.bf16.msra.mxu0 %v225
    %332 = vmatprep.subr.bf16.mxu0 %v222
    %333 = vmatpush1.bf16.msra.mxu0 %v221
    %334 = vmatprep.subr.bf16.mxu0 %v218
    %335 = vmatpush1.bf16.msra.mxu0 %v217
    %336 = vmatprep.subr.bf16.mxu0 0
    %337 = vmatpush2.bf16.msra.mxu0 0
    %338 = vmatprep.subr.bf16.mxu0 0
    %339 = vmatpush2.bf16.msra.mxu0 0
    %340 = vmatprep.subr.bf16.mxu0 0
    %341 = vmatpush2.bf16.msra.mxu0 0
    %342 = vmatprep.subr.bf16.mxu0 0
    %343 = vmatpush2.bf16.msra.mxu0 0
    %344 = vmatprep.subr.bf16.mxu0 0
    %345 = vmatpush2.bf16.msra.mxu0 0
    %346 = vmatprep.subr.bf16.mxu0 0
    %347 = vmatpush2.bf16.msra.mxu0 0
    %348 = vmatprep.subr.bf16.mxu0 0
    %349 = vmatpush2.bf16.msra.mxu0 0
    %350 = vmatprep.subr.bf16.mxu0 0
    %351 = vmatpush2.bf16.msra.mxu0 0
    %352 = vmatprep.mubr.bf16.mxu0 0
    %353 = vmatmul.mubr.bf16.gmra.mxu0 %v118
    %v354 = vpop.f32.mrf.mxu0
    %v355 = vadd.f32 0.0, %v354
    %v356 = vpop.f32.mrf.mxu0
    %v357 = vadd.f32 0.0, %v356
    %v358 = vpop.f32.mrf.mxu0
    %v359 = vpop.f32.mrf.mxu0
    %360 = vdwg.mxu0
    %v361 = vunpack.c.l.bf16 %v116
    %v362 = vunpack.c.h.bf16 %v116
    %v363 = vunpack.c.l.bf16 %v117
    %v364 = vunpack.c.h.bf16 %v117
    %v365 = vadd.f32 %v361, %v314
    %v366 = vadd.f32 %v362, %v316
    %v367 = vadd.f32 %v363, %v355
    %v368 = vadd.f32 %v364, %v357
    %v369 = vxor.u32 %v365, 2147483648
    %v370 = vmul.f32 %v369, 1.442695
    %v371 = vpow.pop %v370
    %v372 = vadd.f32 %v371, 1.0
    %v373 = vrcp.pop %v372
    %v374 = vmul.f32 1.0, %v373
    %v375 = vxor.u32 %v366, 2147483648
    %v376 = vmul.f32 %v375, 1.442695
    %v377 = vpow.pop %v376
    %v378 = vadd.f32 %v377, 1.0
    %v379 = vrcp.pop %v378
    %v380 = vmul.f32 1.0, %v379
    %v381 = vtanh.pop %v367
    %v382 = vxor.u32 %v368, 2147483648
    %v383 = vmul.f32 %v382, 1.442695
    %v384 = vpow.pop %v383
    %v385 = vadd.f32 %v384, 1.0
    %v386 = vrcp.pop %v385
    %v387 = vmul.f32 1.0, %v386
    %v388 = vmul.f32 %v380, %v115
    %v389 = vmul.f32 %v374, %v381
    %v390 = vadd.f32 %v388, %v389
    %v391 = vtanh.pop %v390
    %v392 = vmul.f32 %v387, %v391
    %v393 = vpack.c.bf16 %v392, %v392
    %394 = vst [vmem:[#allocation12] sm:$0xf] %v393
    %s395 = scalar_lea.vmem [#allocation4], 16
    %v396 = vld [vmem:[%s395] sm:$0xff]
    %v397 = vld [vmem:[%s395 + $0x8] sm:$0xff]
    %398 = vmatprep.subr.bf16.mxu0 %v244
    %399 = vmatpush1.bf16.msra.mxu0 %v243
    %400 = vmatprep.subr.bf16.mxu0 %v240
    %401 = vmatpush1.bf16.msra.mxu0 %v239
    %402 = vmatprep.subr.bf16.mxu0 %v236
    %403 = vmatpush1.bf16.msra.mxu0 %v235
    %404 = vmatprep.subr.bf16.mxu0 %v232
    %405 = vmatpush1.bf16.msra.mxu0 %v231
    %406 = vmatprep.subr.bf16.mxu0 %v228
    %407 = vmatpush1.bf16.msra.mxu0 %v227
    %408 = vmatprep.subr.bf16.mxu0 %v224
    %409 = vmatpush1.bf16.msra.mxu0 %v223
    %410 = vmatprep.subr.bf16.mxu0 %v220
    %411 = vmatpush1.bf16.msra.mxu0 %v219
    %412 = vmatprep.subr.bf16.mxu0 %v216
    %413 = vmatpush1.bf16.msra.mxu0 %v215
    %414 = vmatprep.subr.bf16.mxu0 0
    %415 = vmatpush2.bf16.msra.mxu0 0
    %416 = vmatprep.subr.bf16.mxu0 0
    %417 = vmatpush2.bf16.msra.mxu0 0
    %418 = vmatprep.subr.bf16.mxu0 0
    %419 = vmatpush2.bf16.msra.mxu0 0
    %420 = vmatprep.subr.bf16.mxu0 0
    %421 = vmatpush2.bf16.msra.mxu0 0
    %422 = vmatprep.subr.bf16.mxu0 0
    %423 = vmatpush2.bf16.msra.mxu0 0
    %424 = vmatprep.subr.bf16.mxu0 0
    %425 = vmatpush2.bf16.msra.mxu0 0
    %426 = vmatprep.subr.bf16.mxu0 0
    %427 = vmatpush2.bf16.msra.mxu0 0
    %428 = vmatprep.subr.bf16.mxu0 0
    %429 = vmatpush2.bf16.msra.mxu0 0
    %430 = vmatprep.mubr.bf16.mxu0 0
    %431 = vmatmul.mubr.bf16.gmra.mxu0 %v393
    %v432 = vpop.f32.mrf.mxu0
    %v433 = vadd.f32 0.0, %v432
    %v434 = vpop.f32.mrf.mxu0
    %v435 = vadd.f32 0.0, %v434
    %v436 = vpop.f32.mrf.mxu0
    %v437 = vpop.f32.mrf.mxu0
    %438 = vdwg.mxu0
    %439 = vmatprep.subr.bf16.mxu0 %v246
    %440 = vmatpush1.bf16.msra.mxu0 %v245
    %441 = vmatprep.subr.bf16.mxu0 %v242
    %442 = vmatpush1.bf16.msra.mxu0 %v241
    %443 = vmatprep.subr.bf16.mxu0 %v238
    %444 = vmatpush1.bf16.msra.mxu0 %v237
    %445 = vmatprep.subr.bf16.mxu0 %v234
    %446 = vmatpush1.bf16.msra.mxu0 %v233
    %447 = vmatprep.subr.bf16.mxu0 %v230
    %448 = vmatpush1.bf16.msra.mxu0 %v229
    %449 = vmatprep.subr.bf16.mxu0 %v226
    %450 = vmatpush1.bf16.msra.mxu0 %v225
    %451 = vmatprep.subr.bf16.mxu0 %v222
    %452 = vmatpush1.bf16.msra.mxu0 %v221
    %453 = vmatprep.subr.bf16.mxu0 %v218
    %454 = vmatpush1.bf16.msra.mxu0 %v217
    %455 = vmatprep.subr.bf16.mxu0 0
    %456 = vmatpush2.bf16.msra.mxu0 0
    %457 = vmatprep.subr.bf16.mxu0 0
    %458 = vmatpush2.bf16.msra.mxu0 0
    %459 = vmatprep.subr.bf16.mxu0 0
    %460 = vmatpush2.bf16.msra.mxu0 0
    %461 = vmatprep.subr.bf16.mxu0 0
    %462 = vmatpush2.bf16.msra.mxu0 0
    %463 = vmatprep.subr.bf16.mxu0 0
    %464 = vmatpush2.bf16.msra.mxu0 0
    %465 = vmatprep.subr.bf16.mxu0 0
    %466 = vmatpush2.bf16.msra.mxu0 0
    %467 = vmatprep.subr.bf16.mxu0 0
    %468 = vmatpush2.bf16.msra.mxu0 0
    %469 = vmatprep.subr.bf16.mxu0 0
    %470 = vmatpush2.bf16.msra.mxu0 0
    %471 = vmatprep.mubr.bf16.mxu0 0
    %472 = vmatmul.mubr.bf16.gmra.mxu0 %v393
    %v473 = vpop.f32.mrf.mxu0
    %v474 = vadd.f32 0.0, %v473
    %v475 = vpop.f32.mrf.mxu0
    %v476 = vadd.f32 0.0, %v475
    %v477 = vpop.f32.mrf.mxu0
    %v478 = vpop.f32.mrf.mxu0
    %479 = vdwg.mxu0
    %v480 = vunpack.c.l.bf16 %v396
    %v481 = vunpack.c.h.bf16 %v396
    %v482 = vunpack.c.l.bf16 %v397
    %v483 = vunpack.c.h.bf16 %v397
    %v484 = vadd.f32 %v480, %v433
    %v485 = vadd.f32 %v481, %v435
    %v486 = vadd.f32 %v482, %v474
    %v487 = vadd.f32 %v483, %v476
    %v488 = vxor.u32 %v484, 2147483648
    %v489 = vmul.f32 %v488, 1.442695
    %v490 = vpow.pop %v489
    %v491 = vadd.f32 %v490, 1.0
    %v492 = vrcp.pop %v491
    %v493 = vmul.f32 1.0, %v492
    %v494 = vxor.u32 %v485, 2147483648
    %v495 = vmul.f32 %v494, 1.442695
    %v496 = vpow.pop %v495
    %v497 = vadd.f32 %v496, 1.0
    %v498 = vrcp.pop %v497
    %v499 = vmul.f32 1.0, %v498
    %v500 = vtanh.pop %v486
    %v501 = vxor.u32 %v487, 2147483648
    %v502 = vmul.f32 %v501, 1.442695
    %v503 = vpow.pop %v502
    %v504 = vadd.f32 %v503, 1.0
    %v505 = vrcp.pop %v504
    %v506 = vmul.f32 1.0, %v505
    %v507 = vmul.f32 %v499, %v390
    %v508 = vmul.f32 %v493, %v500
    %v509 = vadd.f32 %v507, %v508
    %v510 = vtanh.pop %v509
    %v511 = vmul.f32 %v506, %v510
    %v512 = vpack.c.bf16 %v511, %v511
    %s513 = scalar_lea.vmem [#allocation12], 4
    %514 = vst [vmem:[%s513] sm:$0xf] %v512
    %s515 = scalar_lea.vmem [#allocation4], 32
    %v516 = vld [vmem:[%s515] sm:$0xff]
    %v517 = vld [vmem:[%s515 + $0x8] sm:$0xff]
    %518 = vmatprep.subr.bf16.mxu0 %v244
    %519 = vmatpush1.bf16.msra.mxu0 %v243
    %520 = vmatprep.subr.bf16.mxu0 %v240
    %521 = vmatpush1.bf16.msra.mxu0 %v239
    %522 = vmatprep.subr.bf16.mxu0 %v236
    %523 = vmatpush1.bf16.msra.mxu0 %v235
    %524 = vmatprep.subr.bf16.mxu0 %v232
    %525 = vmatpush1.bf16.msra.mxu0 %v231
    %526 = vmatprep.subr.bf16.mxu0 %v228
    %527 = vmatpush1.bf16.msra.mxu0 %v227
    %528 = vmatprep.subr.bf16.mxu0 %v224
    %529 = vmatpush1.bf16.msra.mxu0 %v223
    %530 = vmatprep.subr.bf16.mxu0 %v220
    %531 = vmatpush1.bf16.msra.mxu0 %v219
    %532 = vmatprep.subr.bf16.mxu0 %v216
    %533 = vmatpush1.bf16.msra.mxu0 %v215
    %534 = vmatprep.subr.bf16.mxu0 0
    %535 = vmatpush2.bf16.msra.mxu0 0
    %536 = vmatprep.subr.bf16.mxu0 0
    %537 = vmatpush2.bf16.msra.mxu0 0
    %538 = vmatprep.subr.bf16.mxu0 0
    %539 = vmatpush2.bf16.msra.mxu0 0
    %540 = vmatprep.subr.bf16.mxu0 0
    %541 = vmatpush2.bf16.msra.mxu0 0
    %542 = vmatprep.subr.bf16.mxu0 0
    %543 = vmatpush2.bf16.msra.mxu0 0
    %544 = vmatprep.subr.bf16.mxu0 0
    %545 = vmatpush2.bf16.msra.mxu0 0
    %546 = vmatprep.subr.bf16.mxu0 0
    %547 = vmatpush2.bf16.msra.mxu0 0
    %548 = vmatprep.subr.bf16.mxu0 0
    %549 = vmatpush2.bf16.msra.mxu0 0
    %550 = vmatprep.mubr.bf16.mxu0 0
    %551 = vmatmul.mubr.bf16.gmra.mxu0 %v512
    %v552 = vpop.f32.mrf.mxu0
    %v553 = vadd.f32 0.0, %v552
    %v554 = vpop.f32.mrf.mxu0
    %v555 = vadd.f32 0.0, %v554
    %v556 = vpop.f32.mrf.mxu0
    %v557 = vpop.f32.mrf.mxu0
    %558 = vdwg.mxu0
    %559 = vmatprep.subr.bf16.mxu0 %v246
    %560 = vmatpush1.bf16.msra.mxu0 %v245
    %561 = vmatprep.subr.bf16.mxu0 %v242
    %562 = vmatpush1.bf16.msra.mxu0 %v241
    %563 = vmatprep.subr.bf16.mxu0 %v238
    %564 = vmatpush1.bf16.msra.mxu0 %v237
    %565 = vmatprep.subr.bf16.mxu0 %v234
    %566 = vmatpush1.bf16.msra.mxu0 %v233
    %567 = vmatprep.subr.bf16.mxu0 %v230
    %568 = vmatpush1.bf16.msra.mxu0 %v229
    %569 = vmatprep.subr.bf16.mxu0 %v226
    %570 = vmatpush1.bf16.msra.mxu0 %v225
    %571 = vmatprep.subr.bf16.mxu0 %v222
    %572 = vmatpush1.bf16.msra.mxu0 %v221
    %573 = vmatprep.subr.bf16.mxu0 %v218
    %574 = vmatpush1.bf16.msra.mxu0 %v217
    %575 = vmatprep.subr.bf16.mxu0 0
    %576 = vmatpush2.bf16.msra.mxu0 0
    %577 = vmatprep.subr.bf16.mxu0 0
    %578 = vmatpush2.bf16.msra.mxu0 0
    %579 = vmatprep.subr.bf16.mxu0 0
    %580 = vmatpush2.bf16.msra.mxu0 0
    %581 = vmatprep.subr.bf16.mxu0 0
    %582 = vmatpush2.bf16.msra.mxu0 0
    %583 = vmatprep.subr.bf16.mxu0 0
    %584 = vmatpush2.bf16.msra.mxu0 0
    %585 = vmatprep.subr.bf16.mxu0 0
    %586 = vmatpush2.bf16.msra.mxu0 0
    %587 = vmatprep.subr.bf16.mxu0 0
    %588 = vmatpush2.bf16.msra.mxu0 0
    %589 = vmatprep.subr.bf16.mxu0 0
    %590 = vmatpush2.bf16.msra.mxu0 0
    %591 = vmatprep.mubr.bf16.mxu0 0
    %592 = vmatmul.mubr.bf16.gmra.mxu0 %v512
    %v593 = vpop.f32.mrf.mxu0
    %v594 = vadd.f32 0.0, %v593
    %v595 = vpop.f32.mrf.mxu0
    %v596 = vadd.f32 0.0, %v595
    %v597 = vpop.f32.mrf.mxu0
    %v598 = vpop.f32.mrf.mxu0
    %599 = vdwg.mxu0
    %v600 = vunpack.c.l.bf16 %v516
    %v601 = vunpack.c.h.bf16 %v516
    %v602 = vunpack.c.l.bf16 %v517
    %v603 = vunpack.c.h.bf16 %v517
    %v604 = vadd.f32 %v600, %v553
    %v605 = vadd.f32 %v601, %v555
    %v606 = vadd.f32 %v602, %v594
    %v607 = vadd.f32 %v603, %v596
    %v608 = vxor.u32 %v604, 2147483648
    %v609 = vmul.f32 %v608, 1.442695
    %v610 = vpow.pop %v609
    %v611 = vadd.f32 %v610, 1.0
    %v612 = vrcp.pop %v611
    %v613 = vmul.f32 1.0, %v612
    %v614 = vxor.u32 %v605, 2147483648
    %v615 = vmul.f32 %v614, 1.442695
    %v616 = vpow.pop %v615
    %v617 = vadd.f32 %v616, 1.0
    %v618 = vrcp.pop %v617
    %v619 = vmul.f32 1.0, %v618
    %v620 = vtanh.pop %v606
    %v621 = vxor.u32 %v607, 2147483648
    %v622 = vmul.f32 %v621, 1.442695
    %v623 = vpow.pop %v622
    %v624 = vadd.f32 %v623, 1.0
    %v625 = vrcp.pop %v624
    %v626 = vmul.f32 1.0, %v625
    %v627 = vmul.f32 %v619, %v509
    %v628 = vmul.f32 %v613, %v620
    %v629 = vadd.f32 %v627, %v628
    %v630 = vtanh.pop %v629
    %v631 = vmul.f32 %v626, %v630
    %v632 = vpack.c.bf16 %v631, %v631
    %s633 = scalar_lea.vmem [#allocation12], 8
    %634 = vst [vmem:[%s633] sm:$0xf] %v632
    %s635 = scalar_lea.vmem [#allocation4], 48
    %v636 = vld [vmem:[%s635] sm:$0xff]
    %v637 = vld [vmem:[%s635 + $0x8] sm:$0xff]
    %638 = vmatprep.subr.bf16.mxu0 %v244
    %639 = vmatpush1.bf16.msra.mxu0 %v243
    %640 = vmatprep.subr.bf16.mxu0 %v240
    %641 = vmatpush1.bf16.msra.mxu0 %v239
    %642 = vmatprep.subr.bf16.mxu0 %v236
    %643 = vmatpush1.bf16.msra.mxu0 %v235
    %644 = vmatprep.subr.bf16.mxu0 %v232
    %645 = vmatpush1.bf16.msra.mxu0 %v231
    %646 = vmatprep.subr.bf16.mxu0 %v228
    %647 = vmatpush1.bf16.msra.mxu0 %v227
    %648 = vmatprep.subr.bf16.mxu0 %v224
    %649 = vmatpush1.bf16.msra.mxu0 %v223
    %650 = vmatprep.subr.bf16.mxu0 %v220
    %651 = vmatpush1.bf16.msra.mxu0 %v219
    %652 = vmatprep.subr.bf16.mxu0 %v216
    %653 = vmatpush1.bf16.msra.mxu0 %v215
    %654 = vmatprep.subr.bf16.mxu0 0
    %655 = vmatpush2.bf16.msra.mxu0 0
    %656 = vmatprep.subr.bf16.mxu0 0
    %657 = vmatpush2.bf16.msra.mxu0 0
    %658 = vmatprep.subr.bf16.mxu0 0
    %659 = vmatpush2.bf16.msra.mxu0 0
    %660 = vmatprep.subr.bf16.mxu0 0
    %661 = vmatpush2.bf16.msra.mxu0 0
    %662 = vmatprep.subr.bf16.mxu0 0
    %663 = vmatpush2.bf16.msra.mxu0 0
    %664 = vmatprep.subr.bf16.mxu0 0
    %665 = vmatpush2.bf16.msra.mxu0 0
    %666 = vmatprep.subr.bf16.mxu0 0
    %667 = vmatpush2.bf16.msra.mxu0 0
    %668 = vmatprep.subr.bf16.mxu0 0
    %669 = vmatpush2.bf16.msra.mxu0 0
    %670 = vmatprep.mubr.bf16.mxu0 0
    %671 = vmatmul.mubr.bf16.gmra.mxu0 %v632
    %v672 = vpop.f32.mrf.mxu0
    %v673 = vadd.f32 0.0, %v672
    %v674 = vpop.f32.mrf.mxu0
    %v675 = vadd.f32 0.0, %v674
    %v676 = vpop.f32.mrf.mxu0
    %v677 = vpop.f32.mrf.mxu0
    %678 = vdwg.mxu0
    %679 = vmatprep.subr.bf16.mxu0 %v246
    %680 = vmatpush1.bf16.msra.mxu0 %v245
    %681 = vmatprep.subr.bf16.mxu0 %v242
    %682 = vmatpush1.bf16.msra.mxu0 %v241
    %683 = vmatprep.subr.bf16.mxu0 %v238
    %684 = vmatpush1.bf16.msra.mxu0 %v237
    %685 = vmatprep.subr.bf16.mxu0 %v234
    %686 = vmatpush1.bf16.msra.mxu0 %v233
    %687 = vmatprep.subr.bf16.mxu0 %v230
    %688 = vmatpush1.bf16.msra.mxu0 %v229
    %689 = vmatprep.subr.bf16.mxu0 %v226
    %690 = vmatpush1.bf16.msra.mxu0 %v225
    %691 = vmatprep.subr.bf16.mxu0 %v222
    %692 = vmatpush1.bf16.msra.mxu0 %v221
    %693 = vmatprep.subr.bf16.mxu0 %v218
    %694 = vmatpush1.bf16.msra.mxu0 %v217
    %695 = vmatprep.subr.bf16.mxu0 0
    %696 = vmatpush2.bf16.msra.mxu0 0
    %697 = vmatprep.subr.bf16.mxu0 0
    %698 = vmatpush2.bf16.msra.mxu0 0
    %699 = vmatprep.subr.bf16.mxu0 0
    %700 = vmatpush2.bf16.msra.mxu0 0
    %701 = vmatprep.subr.bf16.mxu0 0
    %702 = vmatpush2.bf16.msra.mxu0 0
    %703 = vmatprep.subr.bf16.mxu0 0
    %704 = vmatpush2.bf16.msra.mxu0 0
    %705 = vmatprep.subr.bf16.mxu0 0
    %706 = vmatpush2.bf16.msra.mxu0 0
    %707 = vmatprep.subr.bf16.mxu0 0
    %708 = vmatpush2.bf16.msra.mxu0 0
    %709 = vmatprep.subr.bf16.mxu0 0
    %710 = vmatpush2.bf16.msra.mxu0 0
    %711 = vmatprep.mubr.bf16.mxu0 0
    %712 = vmatmul.mubr.bf16.gmra.mxu0 %v632
    %v713 = vpop.f32.mrf.mxu0
    %v714 = vadd.f32 0.0, %v713
    %v715 = vpop.f32.mrf.mxu0
    %v716 = vadd.f32 0.0, %v715
    %v717 = vpop.f32.mrf.mxu0
    %v718 = vpop.f32.mrf.mxu0
    %719 = vdwg.mxu0
    %v720 = vunpack.c.l.bf16 %v636
    %v721 = vunpack.c.h.bf16 %v636
    %v722 = vunpack.c.l.bf16 %v637
    %v723 = vunpack.c.h.bf16 %v637
    %v724 = vadd.f32 %v720, %v673
    %v725 = vadd.f32 %v721, %v675
    %v726 = vadd.f32 %v722, %v714
    %v727 = vadd.f32 %v723, %v716
    %v728 = vxor.u32 %v724, 2147483648
    %v729 = vmul.f32 %v728, 1.442695
    %v730 = vpow.pop %v729
    %v731 = vadd.f32 %v730, 1.0
    %v732 = vrcp.pop %v731
    %v733 = vmul.f32 1.0, %v732
    %v734 = vxor.u32 %v725, 2147483648
    %v735 = vmul.f32 %v734, 1.442695
    %v736 = vpow.pop %v735
    %v737 = vadd.f32 %v736, 1.0
    %v738 = vrcp.pop %v737
    %v739 = vmul.f32 1.0, %v738
    %v740 = vtanh.pop %v726
    %v741 = vxor.u32 %v727, 2147483648
    %v742 = vmul.f32 %v741, 1.442695
    %v743 = vpow.pop %v742
    %v744 = vadd.f32 %v743, 1.0
    %v745 = vrcp.pop %v744
    %v746 = vmul.f32 1.0, %v745
    %v747 = vmul.f32 %v739, %v629
    %v748 = vmul.f32 %v733, %v740
    %v749 = vadd.f32 %v747, %v748
    %v750 = vtanh.pop %v749
    %v751 = vmul.f32 %v746, %v750
    %v752 = vpack.c.bf16 %v751, %v751
    %s753 = scalar_lea.vmem [#allocation12], 12
    %754 = vst [vmem:[%s753] sm:$0xf] %v752
    %s755 = scalar_lea.vmem [#allocation4], 64
    %v756 = vld [vmem:[%s755] sm:$0xff]
    %v757 = vld [vmem:[%s755 + $0x8] sm:$0xff]
    %758 = vmatprep.subr.bf16.mxu0 %v244
    %759 = vmatpush1.bf16.msra.mxu0 %v243
    %760 = vmatprep.subr.bf16.mxu0 %v240
    %761 = vmatpush1.bf16.msra.mxu0 %v239
    %762 = vmatprep.subr.bf16.mxu0 %v236
    %763 = vmatpush1.bf16.msra.mxu0 %v235
    %764 = vmatprep.subr.bf16.mxu0 %v232
    %765 = vmatpush1.bf16.msra.mxu0 %v231
    %766 = vmatprep.subr.bf16.mxu0 %v228
    %767 = vmatpush1.bf16.msra.mxu0 %v227
    %768 = vmatprep.subr.bf16.mxu0 %v224
    %769 = vmatpush1.bf16.msra.mxu0 %v223
    %770 = vmatprep.subr.bf16.mxu0 %v220
    %771 = vmatpush1.bf16.msra.mxu0 %v219
    %772 = vmatprep.subr.bf16.mxu0 %v216
    %773 = vmatpush1.bf16.msra.mxu0 %v215
    %774 = vmatprep.subr.bf16.mxu0 0
    %775 = vmatpush2.bf16.msra.mxu0 0
    %776 = vmatprep.subr.bf16.mxu0 0
    %777 = vmatpush2.bf16.msra.mxu0 0
    %778 = vmatprep.subr.bf16.mxu0 0
    %779 = vmatpush2.bf16.msra.mxu0 0
    %780 = vmatprep.subr.bf16.mxu0 0
    %781 = vmatpush2.bf16.msra.mxu0 0
    %782 = vmatprep.subr.bf16.mxu0 0
    %783 = vmatpush2.bf16.msra.mxu0 0
    %784 = vmatprep.subr.bf16.mxu0 0
    %785 = vmatpush2.bf16.msra.mxu0 0
    %786 = vmatprep.subr.bf16.mxu0 0
    %787 = vmatpush2.bf16.msra.mxu0 0
    %788 = vmatprep.subr.bf16.mxu0 0
    %789 = vmatpush2.bf16.msra.mxu0 0
    %790 = vmatprep.mubr.bf16.mxu0 0
    %791 = vmatmul.mubr.bf16.gmra.mxu0 %v752
    %v792 = vpop.f32.mrf.mxu0
    %v793 = vadd.f32 0.0, %v792
    %v794 = vpop.f32.mrf.mxu0
    %v795 = vadd.f32 0.0, %v794
    %v796 = vpop.f32.mrf.mxu0
    %v797 = vpop.f32.mrf.mxu0
    %798 = vdwg.mxu0
    %799 = vmatprep.subr.bf16.mxu0 %v246
    %800 = vmatpush1.bf16.msra.mxu0 %v245
    %801 = vmatprep.subr.bf16.mxu0 %v242
    %802 = vmatpush1.bf16.msra.mxu0 %v241
    %803 = vmatprep.subr.bf16.mxu0 %v238
    %804 = vmatpush1.bf16.msra.mxu0 %v237
    %805 = vmatprep.subr.bf16.mxu0 %v234
    %806 = vmatpush1.bf16.msra.mxu0 %v233
    %807 = vmatprep.subr.bf16.mxu0 %v230
    %808 = vmatpush1.bf16.msra.mxu0 %v229
    %809 = vmatprep.subr.bf16.mxu0 %v226
    %810 = vmatpush1.bf16.msra.mxu0 %v225
    %811 = vmatprep.subr.bf16.mxu0 %v222
    %812 = vmatpush1.bf16.msra.mxu0 %v221
    %813 = vmatprep.subr.bf16.mxu0 %v218
    %814 = vmatpush1.bf16.msra.mxu0 %v217
    %815 = vmatprep.subr.bf16.mxu0 0
    %816 = vmatpush2.bf16.msra.mxu0 0
    %817 = vmatprep.subr.bf16.mxu0 0
    %818 = vmatpush2.bf16.msra.mxu0 0
    %819 = vmatprep.subr.bf16.mxu0 0
    %820 = vmatpush2.bf16.msra.mxu0 0
    %821 = vmatprep.subr.bf16.mxu0 0
    %822 = vmatpush2.bf16.msra.mxu0 0
    %823 = vmatprep.subr.bf16.mxu0 0
    %824 = vmatpush2.bf16.msra.mxu0 0
    %825 = vmatprep.subr.bf16.mxu0 0
    %826 = vmatpush2.bf16.msra.mxu0 0
    %827 = vmatprep.subr.bf16.mxu0 0
    %828 = vmatpush2.bf16.msra.mxu0 0
    %829 = vmatprep.subr.bf16.mxu0 0
    %830 = vmatpush2.bf16.msra.mxu0 0
    %831 = vmatprep.mubr.bf16.mxu0 0
    %832 = vmatmul.mubr.bf16.gmra.mxu0 %v752
    %v833 = vpop.f32.mrf.mxu0
    %v834 = vadd.f32 0.0, %v833
    %v835 = vpop.f32.mrf.mxu0
    %v836 = vadd.f32 0.0, %v835
    %v837 = vpop.f32.mrf.mxu0
    %v838 = vpop.f32.mrf.mxu0
    %839 = vdwg.mxu0
    %v840 = vunpack.c.l.bf16 %v756
    %v841 = vunpack.c.h.bf16 %v756
    %v842 = vunpack.c.l.bf16 %v757
    %v843 = vunpack.c.h.bf16 %v757
    %v844 = vadd.f32 %v840, %v793
    %v845 = vadd.f32 %v841, %v795
    %v846 = vadd.f32 %v842, %v834
    %v847 = vadd.f32 %v843, %v836
    %v848 = vxor.u32 %v844, 2147483648
    %v849 = vmul.f32 %v848, 1.442695
    %v850 = vpow.pop %v849
    %v851 = vadd.f32 %v850, 1.0
    %v852 = vrcp.pop %v851
    %v853 = vmul.f32 1.0, %v852
    %v854 = vxor.u32 %v845, 2147483648
    %v855 = vmul.f32 %v854, 1.442695
    %v856 = vpow.pop %v855
    %v857 = vadd.f32 %v856, 1.0
    %v858 = vrcp.pop %v857
    %v859 = vmul.f32 1.0, %v858
    %v860 = vtanh.pop %v846
    %v861 = vxor.u32 %v847, 2147483648
    %v862 = vmul.f32 %v861, 1.442695
    %v863 = vpow.pop %v862
    %v864 = vadd.f32 %v863, 1.0
    %v865 = vrcp.pop %v864
    %v866 = vmul.f32 1.0, %v865
    %v867 = vmul.f32 %v859, %v749
    %v868 = vmul.f32 %v853, %v860
    %v869 = vadd.f32 %v867, %v868
    %v870 = vtanh.pop %v869
    %v871 = vmul.f32 %v866, %v870
    %v872 = vpack.c.bf16 %v871, %v871
    %s873 = scalar_lea.vmem [#allocation12], 16
    %874 = vst [vmem:[%s873] sm:$0xf] %v872
    %s875 = scalar_lea.vmem [#allocation4], 80
    %v876 = vld [vmem:[%s875] sm:$0xff]
    %v877 = vld [vmem:[%s875 + $0x8] sm:$0xff]
    %878 = vmatprep.subr.bf16.mxu0 %v244
    %879 = vmatpush1.bf16.msra.mxu0 %v243
    %880 = vmatprep.subr.bf16.mxu0 %v240
    %881 = vmatpush1.bf16.msra.mxu0 %v239
    %882 = vmatprep.subr.bf16.mxu0 %v236
    %883 = vmatpush1.bf16.msra.mxu0 %v235
    %884 = vmatprep.subr.bf16.mxu0 %v232
    %885 = vmatpush1.bf16.msra.mxu0 %v231
    %886 = vmatprep.subr.bf16.mxu0 %v228
    %887 = vmatpush1.bf16.msra.mxu0 %v227
    %888 = vmatprep.subr.bf16.mxu0 %v224
    %889 = vmatpush1.bf16.msra.mxu0 %v223
    %890 = vmatprep.subr.bf16.mxu0 %v220
    %891 = vmatpush1.bf16.msra.mxu0 %v219
    %892 = vmatprep.subr.bf16.mxu0 %v216
    %893 = vmatpush1.bf16.msra.mxu0 %v215
    %894 = vmatprep.subr.bf16.mxu0 0
    %895 = vmatpush2.bf16.msra.mxu0 0
    %896 = vmatprep.subr.bf16.mxu0 0
    %897 = vmatpush2.bf16.msra.mxu0 0
    %898 = vmatprep.subr.bf16.mxu0 0
    %899 = vmatpush2.bf16.msra.mxu0 0
    %900 = vmatprep.subr.bf16.mxu0 0
    %901 = vmatpush2.bf16.msra.mxu0 0
    %902 = vmatprep.subr.bf16.mxu0 0
    %903 = vmatpush2.bf16.msra.mxu0 0
    %904 = vmatprep.subr.bf16.mxu0 0
    %905 = vmatpush2.bf16.msra.mxu0 0
    %906 = vmatprep.subr.bf16.mxu0 0
    %907 = vmatpush2.bf16.msra.mxu0 0
    %908 = vmatprep.subr.bf16.mxu0 0
    %909 = vmatpush2.bf16.msra.mxu0 0
    %910 = vmatprep.mubr.bf16.mxu0 0
    %911 = vmatmul.mubr.bf16.gmra.mxu0 %v872
    %v912 = vpop.f32.mrf.mxu0
    %v913 = vadd.f32 0.0, %v912
    %v914 = vpop.f32.mrf.mxu0
    %v915 = vadd.f32 0.0, %v914
    %v916 = vpop.f32.mrf.mxu0
    %v917 = vpop.f32.mrf.mxu0
    %918 = vdwg.mxu0
    %919 = vmatprep.subr.bf16.mxu0 %v246
    %920 = vmatpush1.bf16.msra.mxu0 %v245
    %921 = vmatprep.subr.bf16.mxu0 %v242
    %922 = vmatpush1.bf16.msra.mxu0 %v241
    %923 = vmatprep.subr.bf16.mxu0 %v238
    %924 = vmatpush1.bf16.msra.mxu0 %v237
    %925 = vmatprep.subr.bf16.mxu0 %v234
    %926 = vmatpush1.bf16.msra.mxu0 %v233
    %927 = vmatprep.subr.bf16.mxu0 %v230
    %928 = vmatpush1.bf16.msra.mxu0 %v229
    %929 = vmatprep.subr.bf16.mxu0 %v226
    %930 = vmatpush1.bf16.msra.mxu0 %v225
    %931 = vmatprep.subr.bf16.mxu0 %v222
    %932 = vmatpush1.bf16.msra.mxu0 %v221
    %933 = vmatprep.subr.bf16.mxu0 %v218
    %934 = vmatpush1.bf16.msra.mxu0 %v217
    %935 = vmatprep.subr.bf16.mxu0 0
    %936 = vmatpush2.bf16.msra.mxu0 0
    %937 = vmatprep.subr.bf16.mxu0 0
    %938 = vmatpush2.bf16.msra.mxu0 0
    %939 = vmatprep.subr.bf16.mxu0 0
    %940 = vmatpush2.bf16.msra.mxu0 0
    %941 = vmatprep.subr.bf16.mxu0 0
    %942 = vmatpush2.bf16.msra.mxu0 0
    %943 = vmatprep.subr.bf16.mxu0 0
    %944 = vmatpush2.bf16.msra.mxu0 0
    %945 = vmatprep.subr.bf16.mxu0 0
    %946 = vmatpush2.bf16.msra.mxu0 0
    %947 = vmatprep.subr.bf16.mxu0 0
    %948 = vmatpush2.bf16.msra.mxu0 0
    %949 = vmatprep.subr.bf16.mxu0 0
    %950 = vmatpush2.bf16.msra.mxu0 0
    %951 = vmatprep.mubr.bf16.mxu0 0
    %952 = vmatmul.mubr.bf16.gmra.mxu0 %v872
    %v953 = vpop.f32.mrf.mxu0
    %v954 = vadd.f32 0.0, %v953
    %v955 = vpop.f32.mrf.mxu0
    %v956 = vadd.f32 0.0, %v955
    %v957 = vpop.f32.mrf.mxu0
    %v958 = vpop.f32.mrf.mxu0
    %959 = vdwg.mxu0
    %v960 = vunpack.c.l.bf16 %v876
    %v961 = vunpack.c.h.bf16 %v876
    %v962 = vunpack.c.l.bf16 %v877
    %v963 = vunpack.c.h.bf16 %v877
    %v964 = vadd.f32 %v960, %v913
    %v965 = vadd.f32 %v961, %v915
    %v966 = vadd.f32 %v962, %v954
    %v967 = vadd.f32 %v963, %v956
    %v968 = vxor.u32 %v964, 2147483648
    %v969 = vmul.f32 %v968, 1.442695
    %v970 = vpow.pop %v969
    %v971 = vadd.f32 %v970, 1.0
    %v972 = vrcp.pop %v971
    %v973 = vmul.f32 1.0, %v972
    %v974 = vxor.u32 %v965, 2147483648
    %v975 = vmul.f32 %v974, 1.442695
    %v976 = vpow.pop %v975
    %v977 = vadd.f32 %v976, 1.0
    %v978 = vrcp.pop %v977
    %v979 = vmul.f32 1.0, %v978
    %v980 = vtanh.pop %v966
    %v981 = vxor.u32 %v967, 2147483648
    %v982 = vmul.f32 %v981, 1.442695
    %v983 = vpow.pop %v982
    %v984 = vadd.f32 %v983, 1.0
    %v985 = vrcp.pop %v984
    %v986 = vmul.f32 1.0, %v985
    %v987 = vmul.f32 %v979, %v869
    %v988 = vmul.f32 %v973, %v980
    %v989 = vadd.f32 %v987, %v988
    %v990 = vtanh.pop %v989
    %v991 = vmul.f32 %v986, %v990
    %v992 = vpack.c.bf16 %v991, %v991
    %s993 = scalar_lea.vmem [#allocation12], 20
    %994 = vst [vmem:[%s993] sm:$0xf] %v992
    %s995 = scalar_lea.vmem [#allocation4], 96
    %v996 = vld [vmem:[%s995] sm:$0xff]
    %v997 = vld [vmem:[%s995 + $0x8] sm:$0xff]
    %998 = vmatprep.subr.bf16.mxu0 %v244
    %999 = vmatpush1.bf16.msra.mxu0 %v243
    %1000 = vmatprep.subr.bf16.mxu0 %v240
    %1001 = vmatpush1.bf16.msra.mxu0 %v239
    %1002 = vmatprep.subr.bf16.mxu0 %v236
    %1003 = vmatpush1.bf16.msra.mxu0 %v235
    %1004 = vmatprep.subr.bf16.mxu0 %v232
    %1005 = vmatpush1.bf16.msra.mxu0 %v231
    %1006 = vmatprep.subr.bf16.mxu0 %v228
    %1007 = vmatpush1.bf16.msra.mxu0 %v227
    %1008 = vmatprep.subr.bf16.mxu0 %v224
    %1009 = vmatpush1.bf16.msra.mxu0 %v223
    %1010 = vmatprep.subr.bf16.mxu0 %v220
    %1011 = vmatpush1.bf16.msra.mxu0 %v219
    %1012 = vmatprep.subr.bf16.mxu0 %v216
    %1013 = vmatpush1.bf16.msra.mxu0 %v215
    %1014 = vmatprep.subr.bf16.mxu0 0
    %1015 = vmatpush2.bf16.msra.mxu0 0
    %1016 = vmatprep.subr.bf16.mxu0 0
    %1017 = vmatpush2.bf16.msra.mxu0 0
    %1018 = vmatprep.subr.bf16.mxu0 0
    %1019 = vmatpush2.bf16.msra.mxu0 0
    %1020 = vmatprep.subr.bf16.mxu0 0
    %1021 = vmatpush2.bf16.msra.mxu0 0
    %1022 = vmatprep.subr.bf16.mxu0 0
    %1023 = vmatpush2.bf16.msra.mxu0 0
    %1024 = vmatprep.subr.bf16.mxu0 0
    %1025 = vmatpush2.bf16.msra.mxu0 0
    %1026 = vmatprep.subr.bf16.mxu0 0
    %1027 = vmatpush2.bf16.msra.mxu0 0
    %1028 = vmatprep.subr.bf16.mxu0 0
    %1029 = vmatpush2.bf16.msra.mxu0 0
    %1030 = vmatprep.mubr.bf16.mxu0 0
    %1031 = vmatmul.mubr.bf16.gmra.mxu0 %v992
    %v1032 = vpop.f32.mrf.mxu0
    %v1033 = vadd.f32 0.0, %v1032
    %v1034 = vpop.f32.mrf.mxu0
    %v1035 = vadd.f32 0.0, %v1034
    %v1036 = vpop.f32.mrf.mxu0
    %v1037 = vpop.f32.mrf.mxu0
    %1038 = vdwg.mxu0
    %1039 = vmatprep.subr.bf16.mxu0 %v246
    %1040 = vmatpush1.bf16.msra.mxu0 %v245
    %1041 = vmatprep.subr.bf16.mxu0 %v242
    %1042 = vmatpush1.bf16.msra.mxu0 %v241
    %1043 = vmatprep.subr.bf16.mxu0 %v238
    %1044 = vmatpush1.bf16.msra.mxu0 %v237
    %1045 = vmatprep.subr.bf16.mxu0 %v234
    %1046 = vmatpush1.bf16.msra.mxu0 %v233
    %1047 = vmatprep.subr.bf16.mxu0 %v230
    %1048 = vmatpush1.bf16.msra.mxu0 %v229
    %1049 = vmatprep.subr.bf16.mxu0 %v226
    %1050 = vmatpush1.bf16.msra.mxu0 %v225
    %1051 = vmatprep.subr.bf16.mxu0 %v222
    %1052 = vmatpush1.bf16.msra.mxu0 %v221
    %1053 = vmatprep.subr.bf16.mxu0 %v218
    %1054 = vmatpush1.bf16.msra.mxu0 %v217
    %1055 = vmatprep.subr.bf16.mxu0 0
    %1056 = vmatpush2.bf16.msra.mxu0 0
    %1057 = vmatprep.subr.bf16.mxu0 0
    %1058 = vmatpush2.bf16.msra.mxu0 0
    %1059 = vmatprep.subr.bf16.mxu0 0
    %1060 = vmatpush2.bf16.msra.mxu0 0
    %1061 = vmatprep.subr.bf16.mxu0 0
    %1062 = vmatpush2.bf16.msra.mxu0 0
    %1063 = vmatprep.subr.bf16.mxu0 0
    %1064 = vmatpush2.bf16.msra.mxu0 0
    %1065 = vmatprep.subr.bf16.mxu0 0
    %1066 = vmatpush2.bf16.msra.mxu0 0
    %1067 = vmatprep.subr.bf16.mxu0 0
    %1068 = vmatpush2.bf16.msra.mxu0 0
    %1069 = vmatprep.subr.bf16.mxu0 0
    %1070 = vmatpush2.bf16.msra.mxu0 0
    %1071 = vmatprep.mubr.bf16.mxu0 0
    %1072 = vmatmul.mubr.bf16.gmra.mxu0 %v992
    %v1073 = vpop.f32.mrf.mxu0
    %v1074 = vadd.f32 0.0, %v1073
    %v1075 = vpop.f32.mrf.mxu0
    %v1076 = vadd.f32 0.0, %v1075
    %v1077 = vpop.f32.mrf.mxu0
    %v1078 = vpop.f32.mrf.mxu0
    %1079 = vdwg.mxu0
    %v1080 = vunpack.c.l.bf16 %v996
    %v1081 = vunpack.c.h.bf16 %v996
    %v1082 = vunpack.c.l.bf16 %v997
    %v1083 = vunpack.c.h.bf16 %v997
    %v1084 = vadd.f32 %v1080, %v1033
    %v1085 = vadd.f32 %v1081, %v1035
    %v1086 = vadd.f32 %v1082, %v1074
    %v1087 = vadd.f32 %v1083, %v1076
    %v1088 = vxor.u32 %v1084, 2147483648
    %v1089 = vmul.f32 %v1088, 1.442695
    %v1090 = vpow.pop %v1089
    %v1091 = vadd.f32 %v1090, 1.0
    %v1092 = vrcp.pop %v1091
    %v1093 = vmul.f32 1.0, %v1092
    %v1094 = vxor.u32 %v1085, 2147483648
    %v1095 = vmul.f32 %v1094, 1.442695
    %v1096 = vpow.pop %v1095
    %v1097 = vadd.f32 %v1096, 1.0
    %v1098 = vrcp.pop %v1097
    %v1099 = vmul.f32 1.0, %v1098
    %v1100 = vtanh.pop %v1086
    %v1101 = vxor.u32 %v1087, 2147483648
    %v1102 = vmul.f32 %v1101, 1.442695
    %v1103 = vpow.pop %v1102
    %v1104 = vadd.f32 %v1103, 1.0
    %v1105 = vrcp.pop %v1104
    %v1106 = vmul.f32 1.0, %v1105
    %v1107 = vmul.f32 %v1099, %v989
    %v1108 = vmul.f32 %v1093, %v1100
    %v1109 = vadd.f32 %v1107, %v1108
    %v1110 = vtanh.pop %v1109
    %v1111 = vmul.f32 %v1106, %v1110
    %v1112 = vpack.c.bf16 %v1111, %v1111
    %s1113 = scalar_lea.vmem [#allocation12], 24
    %1114 = vst [vmem:[%s1113] sm:$0xf] %v1112
    %s1115 = scalar_lea.vmem [#allocation4], 112
    %v1116 = vld [vmem:[%s1115] sm:$0xff]
    %v1117 = vld [vmem:[%s1115 + $0x8] sm:$0xff]
    %1118 = vmatprep.subr.bf16.mxu0 %v244
    %1119 = vmatpush1.bf16.msra.mxu0 %v243
    %1120 = vmatprep.subr.bf16.mxu0 %v240
    %1121 = vmatpush1.bf16.msra.mxu0 %v239
    %1122 = vmatprep.subr.bf16.mxu0 %v236
    %1123 = vmatpush1.bf16.msra.mxu0 %v235
    %1124 = vmatprep.subr.bf16.mxu0 %v232
    %1125 = vmatpush1.bf16.msra.mxu0 %v231
    %1126 = vmatprep.subr.bf16.mxu0 %v228
    %1127 = vmatpush1.bf16.msra.mxu0 %v227
    %1128 = vmatprep.subr.bf16.mxu0 %v224
    %1129 = vmatpush1.bf16.msra.mxu0 %v223
    %1130 = vmatprep.subr.bf16.mxu0 %v220
    %1131 = vmatpush1.bf16.msra.mxu0 %v219
    %1132 = vmatprep.subr.bf16.mxu0 %v216
    %1133 = vmatpush1.bf16.msra.mxu0 %v215
    %1134 = vmatprep.subr.bf16.mxu0 0
    %1135 = vmatpush2.bf16.msra.mxu0 0
    %1136 = vmatprep.subr.bf16.mxu0 0
    %1137 = vmatpush2.bf16.msra.mxu0 0
    %1138 = vmatprep.subr.bf16.mxu0 0
    %1139 = vmatpush2.bf16.msra.mxu0 0
    %1140 = vmatprep.subr.bf16.mxu0 0
    %1141 = vmatpush2.bf16.msra.mxu0 0
    %1142 = vmatprep.subr.bf16.mxu0 0
    %1143 = vmatpush2.bf16.msra.mxu0 0
    %1144 = vmatprep.subr.bf16.mxu0 0
    %1145 = vmatpush2.bf16.msra.mxu0 0
    %1146 = vmatprep.subr.bf16.mxu0 0
    %1147 = vmatpush2.bf16.msra.mxu0 0
    %1148 = vmatprep.subr.bf16.mxu0 0
    %1149 = vmatpush2.bf16.msra.mxu0 0
    %1150 = vmatprep.mubr.bf16.mxu0 0
    %1151 = vmatmul.mubr.bf16.gmra.mxu0 %v1112
    %v1152 = vpop.f32.mrf.mxu0
    %v1153 = vadd.f32 0.0, %v1152
    %v1154 = vpop.f32.mrf.mxu0
    %v1155 = vadd.f32 0.0, %v1154
    %v1156 = vpop.f32.mrf.mxu0
    %v1157 = vpop.f32.mrf.mxu0
    %1158 = vdwg.mxu0
    %1159 = vmatprep.subr.bf16.mxu0 %v246
    %1160 = vmatpush1.bf16.msra.mxu0 %v245
    %1161 = vmatprep.subr.bf16.mxu0 %v242
    %1162 = vmatpush1.bf16.msra.mxu0 %v241
    %1163 = vmatprep.subr.bf16.mxu0 %v238
    %1164 = vmatpush1.bf16.msra.mxu0 %v237
    %1165 = vmatprep.subr.bf16.mxu0 %v234
    %1166 = vmatpush1.bf16.msra.mxu0 %v233
    %1167 = vmatprep.subr.bf16.mxu0 %v230
    %1168 = vmatpush1.bf16.msra.mxu0 %v229
    %1169 = vmatprep.subr.bf16.mxu0 %v226
    %1170 = vmatpush1.bf16.msra.mxu0 %v225
    %1171 = vmatprep.subr.bf16.mxu0 %v222
    %1172 = vmatpush1.bf16.msra.mxu0 %v221
    %1173 = vmatprep.subr.bf16.mxu0 %v218
    %1174 = vmatpush1.bf16.msra.mxu0 %v217
    %1175 = vmatprep.subr.bf16.mxu0 0
    %1176 = vmatpush2.bf16.msra.mxu0 0
    %1177 = vmatprep.subr.bf16.mxu0 0
    %1178 = vmatpush2.bf16.msra.mxu0 0
    %1179 = vmatprep.subr.bf16.mxu0 0
    %1180 = vmatpush2.bf16.msra.mxu0 0
    %1181 = vmatprep.subr.bf16.mxu0 0
    %1182 = vmatpush2.bf16.msra.mxu0 0
    %1183 = vmatprep.subr.bf16.mxu0 0
    %1184 = vmatpush2.bf16.msra.mxu0 0
    %1185 = vmatprep.subr.bf16.mxu0 0
    %1186 = vmatpush2.bf16.msra.mxu0 0
    %1187 = vmatprep.subr.bf16.mxu0 0
    %1188 = vmatpush2.bf16.msra.mxu0 0
    %1189 = vmatprep.subr.bf16.mxu0 0
    %1190 = vmatpush2.bf16.msra.mxu0 0
    %1191 = vmatprep.mubr.bf16.mxu0 0
    %1192 = vmatmul.mubr.bf16.gmra.mxu0 %v1112
    %v1193 = vpop.f32.mrf.mxu0
    %v1194 = vadd.f32 0.0, %v1193
    %v1195 = vpop.f32.mrf.mxu0
    %v1196 = vadd.f32 0.0, %v1195
    %v1197 = vpop.f32.mrf.mxu0
    %v1198 = vpop.f32.mrf.mxu0
    %1199 = vdwg.mxu0
    %v1200 = vunpack.c.l.bf16 %v1116
    %v1201 = vunpack.c.h.bf16 %v1116
    %v1202 = vunpack.c.l.bf16 %v1117
    %v1203 = vunpack.c.h.bf16 %v1117
    %v1204 = vadd.f32 %v1200, %v1153
    %v1205 = vadd.f32 %v1201, %v1155
    %v1206 = vadd.f32 %v1202, %v1194
    %v1207 = vadd.f32 %v1203, %v1196
    %v1208 = vxor.u32 %v1204, 2147483648
    %v1209 = vmul.f32 %v1208, 1.442695
    %v1210 = vpow.pop %v1209
    %v1211 = vadd.f32 %v1210, 1.0
    %v1212 = vrcp.pop %v1211
    %v1213 = vmul.f32 1.0, %v1212
    %v1214 = vxor.u32 %v1205, 2147483648
    %v1215 = vmul.f32 %v1214, 1.442695
    %v1216 = vpow.pop %v1215
    %v1217 = vadd.f32 %v1216, 1.0
    %v1218 = vrcp.pop %v1217
    %v1219 = vmul.f32 1.0, %v1218
    %v1220 = vtanh.pop %v1206
    %v1221 = vxor.u32 %v1207, 2147483648
    %v1222 = vmul.f32 %v1221, 1.442695
    %v1223 = vpow.pop %v1222
    %v1224 = vadd.f32 %v1223, 1.0
    %v1225 = vrcp.pop %v1224
    %v1226 = vmul.f32 1.0, %v1225
    %v1227 = vmul.f32 %v1219, %v1109
    %v1228 = vmul.f32 %v1213, %v1220
    %v1229 = vadd.f32 %v1227, %v1228
    %v1230 = vtanh.pop %v1229
    %v1231 = vmul.f32 %v1226, %v1230
    %v1232 = vpack.c.bf16 %v1231, %v1231
    %s1233 = scalar_lea.vmem [#allocation12], 28
    %1234 = vst [vmem:[%s1233] sm:$0xf] %v1232
    %1235 = vst [vmem:[#allocation2] sm:$0xff] %v1231
    %1236 = vst [vmem:[#allocation3] sm:$0xff] %v1229
    %1237 = vst [vmem:[#allocation13] sm:$0xff] %v1231
    %1238 = vst [vmem:[#allocation15] sm:$0xff] %v1229
    // Predicated region
    $region38: #{tpu_custom_call.1} parent=1 // pred_check
      _
    $region39: #{tpu_custom_call.1} parent=1 // pred_check_branch
      %1240 = sbr.rel (0) target = $region41
    $region40: #{tpu_custom_call.1} parent=1 // pred_region
      %s1242 = ssub.s32 512, 512
      %1243 = vsyncadd [#allocation6], %s1242
      %s1244 = sshll.u32 [#allocation12], 4
      %s1245 = int_to_ptr.vmem [resolvable:$true] %s1244
      %1250 = dma.vmem_to_hbm [thread:$0]  %s1245, 512, %s4, [#allocation6], 64, 64, 4
    $region41: #{tpu_custom_call.1} parent=1 // pred_fallthru
      _
    // Predicated region
    $region42: #{tpu_custom_call.1} parent=1 // pred_check
      _
    $region43: #{tpu_custom_call.1} parent=1 // pred_check_branch
      %1252 = sbr.rel (0) target = $region45
    $region44: #{tpu_custom_call.1} parent=1 // pred_region
      %s1254 = ssub.s32 128, 128
      %1255 = vsyncadd [#allocation14], %s1254
      %s1257 = sshll.u32 [#allocation13], 4
      %s1258 = int_to_ptr.vmem [resolvable:$true] %s1257
      %1260 = dma.vmem_to_hbm [thread:$0]  %s1258, 128, %s5, [#allocation14]
    $region45: #{tpu_custom_call.1} parent=1 // pred_fallthru
      _
    // Predicated region
    $region46: #{tpu_custom_call.1} parent=1 // pred_check
      _
    $region47: #{tpu_custom_call.1} parent=1 // pred_check_branch
      %1262 = sbr.rel (0) target = $region49
    $region48: #{tpu_custom_call.1} parent=1 // pred_region
      %s1264 = ssub.s32 128, 128
      %1265 = vsyncadd [#allocation14], %s1264
      %s1267 = sshll.u32 [#allocation15], 4
      %s1268 = int_to_ptr.vmem [resolvable:$true] %s1267
      %1270 = dma.vmem_to_hbm [thread:$0]  %s1268, 128, %s6, [#allocation14]
    $region49: #{tpu_custom_call.1} parent=1 // pred_fallthru
      _
    // Predicated region
    $region50: #{tpu_custom_call.1} parent=1 // pred_check
      _
    $region51: #{tpu_custom_call.1} parent=1 // pred_check_branch
      %1272 = sbr.rel (0) target = $region53
    $region52: #{tpu_custom_call.1} parent=1 // pred_region
      %1273 = dma.done [#allocation6], 512
    $region53: #{tpu_custom_call.1} parent=1 // pred_fallthru
      _
    // Predicated region
    $region54: #{tpu_custom_call.1} parent=1 // pred_check
      _
    $region55: #{tpu_custom_call.1} parent=1 // pred_check_branch
      %1275 = sbr.rel (0) target = $region57
    $region56: #{tpu_custom_call.1} parent=1 // pred_region
      %1276 = dma.done [#allocation14], 128
    $region57: #{tpu_custom_call.1} parent=1 // pred_fallthru
      _
    // Predicated region
    $region58: #{tpu_custom_call.1} parent=1 // pred_check
      _
    $region59: #{tpu_custom_call.1} parent=1 // pred_check_branch
      %1278 = sbr.rel (0) target = $region61
    $region60: #{tpu_custom_call.1} parent=1 // pred_region
      %1279 = dma.done [#allocation14], 128
    $region61: #{tpu_custom_call.1} parent=1 // pred_fallthru
      _
    %1280 = vsyncpa [#allocation5], 1
    %1281 = vsyncpa [#allocation8], 1
    %1282 = vsyncpa [#allocation11], 1
    %1283 = vsyncpa [#allocation6], 1
    %1284 = vsyncpa [#allocation14], 1

</llo_original>
